<compile_context>
chip_gen: v5e
topology: v5e:2x2
jax: 0.10.0
libtpu: 0.0.40
codegen_flags: <defaults>
</compile_context>

<pallas_src>
import jax
import jax.numpy as jnp
from jax.experimental import pallas as pl
from jax.experimental.pallas import tpu as pltpu


def _vgg_block_kernel(x_ref, w_ref, b_ref, o_ref):
    # x_ref: (1, TH+4, W, Cp)   f32, row tile with 2-row halo top/bottom,
    #                           channels zero-padded to Cp (lane-dense)
    # w_ref: (9*Cp, Coutp)      bf16, taps flattened as (kh*3 + kw)*Cp + ci
    # b_ref: (1, Coutp)         f32
    # o_ref: (1, TH, W, Coutp)  f32, lane-dense output
    TH = o_ref.shape[1]
    W = o_ref.shape[2]
    Cp = x_ref.shape[3]
    Coutp = o_ref.shape[3]
    HW = TH * W

    # Flatten (rows, W) into the sublane axis once; W % 8 == 0 and Cp % 128 == 0
    # make this a pure tile-stacking reshape (no relayout).
    flat = x_ref[0].reshape((TH + 4) * W, Cp)

    # Output-pixel column index (for masking the dw = -1/+1 taps at the W edges).
    col = jax.lax.broadcasted_iota(jnp.int32, (HW, Cp), 0) % W

    # Build the im2col patch: each tap is a sublane-shifted slice of `flat`.
    # Output pixel p = h*W + w needs flat[p + (kh+1)*W + (kw-1)] for tap (kh, kw).
    pieces = []
    for kh in range(3):
        for dwp in (-1, 0, 1):            # dwp = kw - 1
            s = (kh + 1) * W + dwp        # always >= W-1 >= 0 (2-row top halo)
            piece = flat[s:s + HW, :]
            if dwp == -1:
                piece = jnp.where(col == 0, 0.0, piece)       # left zero-pad
            elif dwp == 1:
                piece = jnp.where(col == W - 1, 0.0, piece)   # right zero-pad
            pieces.append(piece)
    patch = jnp.concatenate(pieces, axis=1).astype(jnp.bfloat16)  # (HW, 9*Cp)

    # Single fused deep-K MXU matmul, f32 accumulation.
    acc = jnp.dot(patch, w_ref[...], preferred_element_type=jnp.float32)

    # Epilogue in f32 on the VPU (bias + ReLU), lane-dense store.
    acc = acc + b_ref[0, :][None, :]
    acc = jnp.maximum(acc, 0.0)
    o_ref[...] = acc.reshape(1, TH, W, Coutp).astype(o_ref.dtype)


def vgg_block_forward(x_nchw, weight, bias, *, row_tile=8):
    """Conv2d(k=3, pad=1) + ReLU.

    x_nchw: (N, Cin, H, W)
    weight: (Cout, Cin, 3, 3)   (PyTorch layout)
    bias:   (Cout,)
    returns (N, Cout, H, W)
    """
    N, Cin, H, W = x_nchw.shape
    Cout = weight.shape[0]

    LANE = 128
    Cp = ((Cin + LANE - 1) // LANE) * LANE
    Coutp = ((Cout + LANE - 1) // LANE) * LANE

    TH = row_tile if (H % row_tile == 0) else H
    T = H // TH

    # NCHW -> NHWC, zero-pad channels to Cp, pad H by 2 rows top and bottom
    # (1 real conv halo row + 1 extra so all in-kernel shifts are non-negative).
    x = jnp.transpose(x_nchw, (0, 2, 3, 1)).astype(jnp.float32)
    x = jnp.pad(x, ((0, 0), (2, 2), (0, 0), (0, Cp - Cin)))

    # Pre-materialize overlapping row tiles (halo of 4 rows total per tile).
    tiles = [x[:, t * TH: t * TH + TH + 4] for t in range(T)]
    x_tiles = jnp.stack(tiles, axis=1).reshape(N * T, TH + 4, W, Cp)

    # (Cout, Cin, kh, kw) -> (kh, kw, Cin, Cout) -> zero-pad -> (9*Cp, Coutp) bf16.
    w = jnp.transpose(weight, (2, 3, 1, 0))
    w = jnp.pad(w, ((0, 0), (0, 0), (0, Cp - Cin), (0, Coutp - Cout)))
    w2d = w.reshape(9 * Cp, Coutp).astype(jnp.bfloat16)

    b2d = jnp.pad(bias, (0, Coutp - Cout)).reshape(1, Coutp).astype(jnp.float32)

    out = pl.pallas_call(
        _vgg_block_kernel,
        out_shape=jax.ShapeDtypeStruct((N * T, TH, W, Coutp), jnp.float32),
        grid_spec=pltpu.PrefetchScalarGridSpec(
            num_scalar_prefetch=0,
            grid=(N * T,),
            in_specs=[
                pl.BlockSpec((1, TH + 4, W, Cp), lambda i: (i, 0, 0, 0)),
                pl.BlockSpec((9 * Cp, Coutp), lambda i: (0, 0)),   # resident
                pl.BlockSpec((1, Coutp), lambda i: (0, 0)),        # resident
            ],
            out_specs=pl.BlockSpec((1, TH, W, Coutp), lambda i: (i, 0, 0, 0)),
        ),
        compiler_params=pltpu.CompilerParams(
            dimension_semantics=("parallel",),
            vmem_limit_bytes=32 * 1024 * 1024),
    )(x_tiles, w2d, b2d)

    # (N*T, TH, W, Coutp) -> (N, H, W, Cout) -> NCHW
    out = out.reshape(N, H, W, Coutp)[:, :, :, :Cout]
    return jnp.transpose(out, (0, 3, 1, 2)).astype(x_nchw.dtype)


def _reference_forward(x_nchw, weight, bias):
    out = jax.lax.conv_general_dilated(
        x_nchw, weight,
        window_strides=(1, 1),
        padding=((1, 1), (1, 1)),
        dimension_numbers=("NCHW", "OIHW", "NCHW"),
    )
    out = out + bias.reshape(1, -1, 1, 1)
    return jnp.maximum(out, 0.0)


if __name__ == "__main__":
    # Small deterministic config: N=2, Cin=4, Cout=8, H=W=16.
    N, Cin, Cout, H, W = 2, 4, 8, 16, 16

    key = jax.random.PRNGKey(0)
    kx, kw, kb = jax.random.split(key, 3)
    x = jax.random.normal(kx, (N, Cin, H, W), dtype=jnp.float32)
    # Deterministic synthetic params (shapes match nn.Conv2d(Cin, Cout, 3, padding=1)).
    fan_in = Cin * 3 * 3
    bound = 1.0 / (fan_in ** 0.5)
    weight = jax.random.uniform(kw, (Cout, Cin, 3, 3), jnp.float32, -bound, bound)
    bias = jax.random.uniform(kb, (Cout,), jnp.float32, -bound, bound)

    out = vgg_block_forward(x, weight, bias)
    out = jax.block_until_ready(out)

    ref = jax.block_until_ready(_reference_forward(x, weight, bias))
    assert out.shape == (N, Cout, H, W)
    # bf16 matmul operands with f32 accumulation: loosen tolerance vs f32 reference.
    assert jnp.allclose(out, ref, atol=3e-2, rtol=3e-2), "mismatch vs reference conv"

    print("KERNEL_OK")
</pallas_src>

<mosaic_0001>
module attributes {stable_mosaic.version = 11 : i64} {
  func.func @_vgg_block_kernel(%arg0: i32, %arg1: memref<1x12x16x128xf32, #tpu.memory_space<vmem>>, %arg2: memref<1152x128xbf16, #tpu.memory_space<vmem>>, %arg3: memref<1x128xf32, #tpu.memory_space<vmem>>, %arg4: memref<1x8x16x128xf32, #tpu.memory_space<vmem>>) attributes {dimension_semantics = [#tpu.dimension_semantics<parallel>], iteration_bounds = array<i64: 4>, scalar_prefetch = 0 : i64, scratch_operands = 0 : i64, tpu.core_type = #tpu.core_type<tc>, window_params = [{transform_indices = @transform_0, window_bounds = array<i64: 1, 12, 16, 128>}, {pipeline_mode = #tpu.pipeline_mode<synchronous>, transform_indices = @transform_1, window_bounds = array<i64: 1152, 128>}, {pipeline_mode = #tpu.pipeline_mode<synchronous>, transform_indices = @transform_2, window_bounds = array<i64: 1, 128>}, {transform_indices = @transform_3, window_bounds = array<i64: 1, 8, 16, 128>}]} {
    %c0 = arith.constant 0 : index
    %c0_0 = arith.constant 0 : index
    %c0_1 = arith.constant 0 : index
    %c0_2 = arith.constant 0 : index
    %0 = vector.load %arg1[%c0, %c0_0, %c0_1, %c0_2] : memref<1x12x16x128xf32, #tpu.memory_space<vmem>>, vector<1x12x16x128xf32>
    %1 = vector.shape_cast %0 : vector<1x12x16x128xf32> to vector<12x16x128xf32>
    %2 = vector.shape_cast %1 : vector<12x16x128xf32> to vector<192x128xf32>
    %3 = tpu.iota {dimensions = array<i32: 0>} : vector<128x128xi32>
    %c16_i32 = arith.constant 16 : i32
    %c0_i32 = arith.constant 0 : i32
    %4 = arith.cmpi eq, %c16_i32, %c0_i32 : i32
    %c1_i32 = arith.constant 1 : i32
    %5 = arith.select %4, %c1_i32, %c16_i32 : i32
    %6 = vector.broadcast %5 : i32 to vector<128x128xi32>
    %7 = arith.remsi %3, %6 : vector<128x128xi32>
    %c0_i32_3 = arith.constant 0 : i32
    %8 = vector.broadcast %c0_i32_3 : i32 to vector<128x128xi32>
    %9 = arith.cmpi ne, %7, %8 : vector<128x128xi32>
    %c0_i32_4 = arith.constant 0 : i32
    %10 = vector.broadcast %c0_i32_4 : i32 to vector<128x128xi32>
    %11 = arith.cmpi slt, %7, %10 : vector<128x128xi32>
    %c0_i32_5 = arith.constant 0 : i32
    %12 = arith.cmpi slt, %5, %c0_i32_5 : i32
    %13 = vector.broadcast %12 : i1 to vector<128x128xi1>
    %14 = vector.broadcast %13 : vector<128x128xi1> to vector<128x128xi1>
    %15 = arith.xori %11, %14 : vector<128x128xi1>
    %16 = arith.andi %15, %9 : vector<128x128xi1>
    %17 = vector.broadcast %5 : i32 to vector<128x128xi32>
    %18 = arith.addi %7, %17 : vector<128x128xi32>
    %19 = arith.select %16, %18, %7 : vector<128x128xi1>, vector<128x128xi32>
    %20 = vector.extract_strided_slice %2 {offsets = [15, 0], sizes = [128, 128], strides = [1, 1]} : vector<192x128xf32> to vector<128x128xf32>
    %c0_i32_6 = arith.constant 0 : i32
    %21 = vector.broadcast %c0_i32_6 : i32 to vector<128x128xi32>
    %22 = arith.cmpi eq, %19, %21 : vector<128x128xi32>
    %cst = arith.constant 0.000000e+00 : f32
    %23 = vector.broadcast %cst : f32 to vector<128x128xf32>
    %24 = arith.select %22, %23, %20 : vector<128x128xi1>, vector<128x128xf32>
    %25 = vector.extract_strided_slice %2 {offsets = [16, 0], sizes = [128, 128], strides = [1, 1]} : vector<192x128xf32> to vector<128x128xf32>
    %26 = vector.extract_strided_slice %2 {offsets = [17, 0], sizes = [128, 128], strides = [1, 1]} : vector<192x128xf32> to vector<128x128xf32>
    %c15_i32 = arith.constant 15 : i32
    %27 = vector.broadcast %c15_i32 : i32 to vector<128x128xi32>
    %28 = arith.cmpi eq, %19, %27 : vector<128x128xi32>
    %cst_7 = arith.constant 0.000000e+00 : f32
    %29 = vector.broadcast %cst_7 : f32 to vector<128x128xf32>
    %30 = arith.select %28, %29, %26 : vector<128x128xi1>, vector<128x128xf32>
    %31 = vector.extract_strided_slice %2 {offsets = [31, 0], sizes = [128, 128], strides = [1, 1]} : vector<192x128xf32> to vector<128x128xf32>
    %c0_i32_8 = arith.constant 0 : i32
    %32 = vector.broadcast %c0_i32_8 : i32 to vector<128x128xi32>
    %33 = arith.cmpi eq, %19, %32 : vector<128x128xi32>
    %cst_9 = arith.constant 0.000000e+00 : f32
    %34 = vector.broadcast %cst_9 : f32 to vector<128x128xf32>
    %35 = arith.select %33, %34, %31 : vector<128x128xi1>, vector<128x128xf32>
    %36 = vector.extract_strided_slice %2 {offsets = [32, 0], sizes = [128, 128], strides = [1, 1]} : vector<192x128xf32> to vector<128x128xf32>
    %37 = vector.extract_strided_slice %2 {offsets = [33, 0], sizes = [128, 128], strides = [1, 1]} : vector<192x128xf32> to vector<128x128xf32>
    %c15_i32_10 = arith.constant 15 : i32
    %38 = vector.broadcast %c15_i32_10 : i32 to vector<128x128xi32>
    %39 = arith.cmpi eq, %19, %38 : vector<128x128xi32>
    %cst_11 = arith.constant 0.000000e+00 : f32
    %40 = vector.broadcast %cst_11 : f32 to vector<128x128xf32>
    %41 = arith.select %39, %40, %37 : vector<128x128xi1>, vector<128x128xf32>
    %42 = vector.extract_strided_slice %2 {offsets = [47, 0], sizes = [128, 128], strides = [1, 1]} : vector<192x128xf32> to vector<128x128xf32>
    %c0_i32_12 = arith.constant 0 : i32
    %43 = vector.broadcast %c0_i32_12 : i32 to vector<128x128xi32>
    %44 = arith.cmpi eq, %19, %43 : vector<128x128xi32>
    %cst_13 = arith.constant 0.000000e+00 : f32
    %45 = vector.broadcast %cst_13 : f32 to vector<128x128xf32>
    %46 = arith.select %44, %45, %42 : vector<128x128xi1>, vector<128x128xf32>
    %47 = vector.extract_strided_slice %2 {offsets = [48, 0], sizes = [128, 128], strides = [1, 1]} : vector<192x128xf32> to vector<128x128xf32>
    %48 = vector.extract_strided_slice %2 {offsets = [49, 0], sizes = [128, 128], strides = [1, 1]} : vector<192x128xf32> to vector<128x128xf32>
    %c15_i32_14 = arith.constant 15 : i32
    %49 = vector.broadcast %c15_i32_14 : i32 to vector<128x128xi32>
    %50 = arith.cmpi eq, %19, %49 : vector<128x128xi32>
    %cst_15 = arith.constant 0.000000e+00 : f32
    %51 = vector.broadcast %cst_15 : f32 to vector<128x128xf32>
    %52 = arith.select %50, %51, %48 : vector<128x128xi1>, vector<128x128xf32>
    %53 = tpu.concatenate %24, %25, %30, %35, %36, %41, %46, %47, %52 in 1 : vector<128x128xf32>, vector<128x128xf32>, vector<128x128xf32>, vector<128x128xf32>, vector<128x128xf32>, vector<128x128xf32>, vector<128x128xf32>, vector<128x128xf32>, vector<128x128xf32> -> vector<128x1152xf32>
    %54 = arith.truncf %53 : vector<128x1152xf32> to vector<128x1152xbf16>
    %c0_16 = arith.constant 0 : index
    %c0_17 = arith.constant 0 : index
    %55 = vector.load %arg2[%c0_16, %c0_17] : memref<1152x128xbf16, #tpu.memory_space<vmem>>, vector<1152x128xbf16>
    %cst_18 = arith.constant dense<0.000000e+00> : vector<128x128xf32>
    %56 = tpu.matmul %54, %55, %cst_18 {dimension_numbers = #tpu.dot_dimension_numbers<[1], [0], [0], [1], [0, 0, 1, 1], [], []>} : vector<128x1152xbf16>, vector<1152x128xbf16>, vector<128x128xf32> -> vector<128x128xf32>
    %c0_19 = arith.constant 0 : index
    %c0_20 = arith.constant 0 : index
    %57 = vector.load %arg3[%c0_19, %c0_20] : memref<1x128xf32, #tpu.memory_space<vmem>>, vector<1x128xf32>
    %58 = vector.shape_cast %57 : vector<1x128xf32> to vector<128xf32>
    %59 = vector.shape_cast %58 : vector<128xf32> to vector<1x128xf32>
    %60 = vector.broadcast %59 : vector<1x128xf32> to vector<128x128xf32>
    %61 = arith.addf %56, %60 : vector<128x128xf32>
    %cst_21 = arith.constant 0.000000e+00 : f32
    %62 = vector.broadcast %cst_21 : f32 to vector<128x128xf32>
    %63 = arith.maximumf %61, %62 : vector<128x128xf32>
    %64 = vector.shape_cast %63 : vector<128x128xf32> to vector<1x8x16x128xf32>
    %c0_22 = arith.constant 0 : index
    %c0_23 = arith.constant 0 : index
    %c0_24 = arith.constant 0 : index
    %c0_25 = arith.constant 0 : index
    %65 = vector.load %arg4[%c0_22, %c0_23, %c0_24, %c0_25] : memref<1x8x16x128xf32, #tpu.memory_space<vmem>>, vector<1x8x16x128xf32>
    tpu.vector_store %arg4[%c0_22, %c0_23, %c0_24, %c0_25], %64 {strides = array<i32>} : memref<1x8x16x128xf32, #tpu.memory_space<vmem>>, vector<1x8x16x128xf32>,
    return
  }
  func.func @transform_0(%arg0: i32) -> (i32, i32, i32, i32) {
    %c0_i32 = arith.constant 0 : i32
    %c0_i32_0 = arith.constant 0 : i32
    %c0_i32_1 = arith.constant 0 : i32
    %c0_i32_2 = arith.constant 0 : i32
    return %arg0, %c0_i32, %c0_i32_0, %c0_i32_1 : i32, i32, i32, i32
  }
  func.func @transform_1(%arg0: i32) -> (i32, i32) {
    %c0_i32 = arith.constant 0 : i32
    %c0_i32_0 = arith.constant 0 : i32
    %c0_i32_1 = arith.constant 0 : i32
    return %c0_i32, %c0_i32_0 : i32, i32
  }
  func.func @transform_2(%arg0: i32) -> (i32, i32) {
    %c0_i32 = arith.constant 0 : i32
    %c0_i32_0 = arith.constant 0 : i32
    %c0_i32_1 = arith.constant 0 : i32
    return %c0_i32, %c0_i32_0 : i32, i32
  }
  func.func @transform_3(%arg0: i32) -> (i32, i32, i32, i32) {
    %c0_i32 = arith.constant 0 : i32
    %c0_i32_0 = arith.constant 0 : i32
    %c0_i32_1 = arith.constant 0 : i32
    %c0_i32_2 = arith.constant 0 : i32
    return %arg0, %c0_i32, %c0_i32_0, %c0_i32_1 : i32, i32, i32, i32
  }
}

</mosaic_0001>

<llo_original>
// kernel: tpu_custom_call.1
$region0: #{tpu_custom_call.1}
  #allocation0 [shape = 'u32[]', space=smem, size = 0x4, offset = 0x4, fixed_abs, tag = 'smem constant byte address 0x4 - core index']
  #allocation1 [shape = 'u32[72,128]{1,0:T(1,128)}', space=vmem, size = 0x9000, scoped, tag = 'internal scratch']
  %s0 = inlined_call_operand.hbm [shape: f32[4,12,16,128], index: 0, kind: input, shape index: {}]
  %s1 = inlined_call_operand.hbm [shape: bf16[1152,128], index: 1, kind: input, shape index: {}]
  %s2 = inlined_call_operand.vmem [shape: f32[1,128], index: 2, kind: input, shape index: {}]
  %s3 = inlined_call_operand.hbm [shape: f32[4,8,16,128], index: 3, kind: output, shape index: {}]
  %s4 = sld [smem:[#allocation0]]
  $region53: #{tpu_custom_call.1} parent=0
    _
  %s6 = ssub.s32 1, %s4
  %s7 = scalar_select 0, %s6, %s4
  $region1: #{tpu_custom_call.1} parent=0
    #allocation2 [shape = 'u8[196608]{0}', space=vmem, size = 0x30000, scoped, tag = 'input window, operand 0']
    #allocation3 [shape = 's32[2]{0}', space=sflag, size = 0x8, scoped, tag = 'scoped memory for tpu_custom_call.1']
    #allocation4 [shape = 's32[2]{0}', space=sflag, size = 0x8, scoped, tag = 'scoped memory for tpu_custom_call.1']
    #allocation5 [shape = 'u8[294912]{0}', space=vmem, size = 0x48000, scoped, tag = 'input window, operand 1, single buffered']
    #allocation6 [shape = 's32[1]{0}', space=sflag, size = 0x4, scoped, tag = 'scoped memory for tpu_custom_call.1']
    #allocation7 [shape = 'u8[131072]{0}', space=vmem, size = 0x20000, scoped, tag = 'output window, operand 0']
    %8 = vsyncpa [#allocation3], 0
    %s9 = scalar_lea.sflag [#allocation3], 1
    %10 = vsyncpa %s9, 0
    %11 = vsyncpa [#allocation6], 0
    %12 = vsyncpa [#allocation4], 0
    %s13 = scalar_lea.sflag [#allocation4], 1
    %14 = vsyncpa %s13, 0
    loop: start=0, step=1, limit=6
    $region2: #{tpu_custom_call.1} parent=1 // loop_pre_header
      _
    $region3: #{tpu_custom_call.1} parent=1 // loop_header
      %s16 = sphi 0, %s20
      %p17 = scmp.ge.s32.totalorder %s16, 6
      %s26 = sphi 0, %s28
      %s29 = sphi 0, %s26
      %s30 = sphi 0, %s29
      %s46 = sphi 0, %s30
      %s50 = sphi 0, %s50
      %s52 = sphi 0, %s50
      %s53 = sphi 0, %s52
      %s67 = sphi 0, %s53
      %s71 = sphi 0, %s71
      %s73 = sphi 0, %s71
      %s74 = sphi 0, %s73
      %s88 = sphi 0, %s74
      %s94 = sphi 0, %s96
      %s97 = sphi 0, %s94
      %s98 = sphi 0, %s97
      %s114 = sphi 0, %s98
    $region4: #{tpu_custom_call.1} parent=1 // loop_header_branch
      %19 = sbr.rel (%p17) target = $region8
    $region5: #{tpu_custom_call.1} parent=1 // loop_body
      %s21 = ssub.s32 %s16, 1
      %s22 = ssub.s32 %s16, 2
      %s23 = sadd.s32 %s16, 1
      %s24 = ssub.s32 %s16, %s23
      %p25 = scmp.eq.s32.totalorder %s24, 0
      %s27 = sadd.s32 %s26, 1
      %s28 = scalar_select %p25, %s26, %s27
      %p31 = pneg %p25
      %p32 = scmp.eq.s32.totalorder %s16, 3
      %p33 = por %p31, %p32
      %p34 = scmp.ne.s32.totalorder %s26, %s29
      %p35 = scmp.eq.s32.totalorder %s16, 0
      %p36 = por %p34, %p35
      %p37 = scmp.ne.s32.totalorder %s26, %s29
      %p38 = scmp.eq.s32.totalorder %s21, 3
      %p39 = por %p37, %p38
      %p40 = scmp.ne.s32.totalorder %s29, %s30
      %p41 = scmp.eq.s32.totalorder %s21, 0
      %p42 = por %p40, %p41
      %p43 = scmp.ne.s32.totalorder %s29, %s30
      %p44 = scmp.eq.s32.totalorder %s22, 3
      %p45 = por %p43, %p44
      %p47 = scmp.ne.s32.totalorder %s30, %s46
      %p48 = scmp.eq.s32.totalorder %s22, 0
      %p49 = por %p47, %p48
      %s51 = sadd.s32 %s50, 1
      %p54 = scmp.eq.s32.totalorder %s16, 3
      %p55 = scmp.ne.s32.totalorder %s50, %s52
      %p56 = scmp.eq.s32.totalorder %s16, 0
      %p57 = por %p55, %p56
      %p58 = scmp.ne.s32.totalorder %s50, %s52
      %p59 = scmp.eq.s32.totalorder %s21, 3
      %p60 = por %p58, %p59
      %p61 = scmp.ne.s32.totalorder %s52, %s53
      %p62 = scmp.eq.s32.totalorder %s21, 0
      %p63 = por %p61, %p62
      %p64 = scmp.ne.s32.totalorder %s52, %s53
      %p65 = scmp.eq.s32.totalorder %s22, 3
      %p66 = por %p64, %p65
      %p68 = scmp.ne.s32.totalorder %s53, %s67
      %p69 = scmp.eq.s32.totalorder %s22, 0
      %p70 = por %p68, %p69
      %s72 = sadd.s32 %s71, 1
      %p75 = scmp.eq.s32.totalorder %s16, 3
      %p76 = scmp.ne.s32.totalorder %s71, %s73
      %p77 = scmp.eq.s32.totalorder %s16, 0
      %p78 = por %p76, %p77
      %p79 = scmp.ne.s32.totalorder %s71, %s73
      %p80 = scmp.eq.s32.totalorder %s21, 3
      %p81 = por %p79, %p80
      %p82 = scmp.ne.s32.totalorder %s73, %s74
      %p83 = scmp.eq.s32.totalorder %s21, 0
      %p84 = por %p82, %p83
      %p85 = scmp.ne.s32.totalorder %s73, %s74
      %p86 = scmp.eq.s32.totalorder %s22, 3
      %p87 = por %p85, %p86
      %p89 = scmp.ne.s32.totalorder %s74, %s88
      %p90 = scmp.eq.s32.totalorder %s22, 0
      %p91 = por %p89, %p90
      %s92 = ssub.s32 %s16, %s23
      %p93 = scmp.eq.s32.totalorder %s92, 0
      %s95 = sadd.s32 %s94, 1
      %s96 = scalar_select %p93, %s94, %s95
      %p99 = pneg %p93
      %p100 = scmp.eq.s32.totalorder %s16, 3
      %p101 = por %p99, %p100
      %p102 = scmp.ne.s32.totalorder %s94, %s97
      %p103 = scmp.eq.s32.totalorder %s16, 0
      %p104 = por %p102, %p103
      %p105 = scmp.ne.s32.totalorder %s94, %s97
      %p106 = scmp.eq.s32.totalorder %s21, 3
      %p107 = por %p105, %p106
      %p108 = scmp.ne.s32.totalorder %s97, %s98
      %p109 = scmp.eq.s32.totalorder %s21, 0
      %p110 = por %p108, %p109
      %p111 = scmp.ne.s32.totalorder %s97, %s98
      %p112 = scmp.eq.s32.totalorder %s22, 3
      %p113 = por %p111, %p112
      %p115 = scmp.ne.s32.totalorder %s98, %s114
      %p116 = scmp.eq.s32.totalorder %s22, 0
      %p117 = por %p115, %p116
      %p118 = scmp.le.s32.totalorder 1, %s16
      %p119 = scmp.lt.s32.totalorder %s16, 5
      %p120 = pnand %p118, %p119
      %p121 = pneg %p120
      // Predicated region
      $region9: #{tpu_custom_call.1} parent=5 // pred_check
        _
      $region10: #{tpu_custom_call.1} parent=5 // pred_check_branch
        %123 = sbr.rel (%p120) target = $region12
      $region11: #{tpu_custom_call.1} parent=5 // pred_region
        %s124 = ssub.s32 %s16, 1
        // Predicated region
        $region13: #{tpu_custom_call.1} parent=11 // pred_check
          %p125 = pneg %p63
        $region14: #{tpu_custom_call.1} parent=11 // pred_check_branch
          %127 = sbr.rel (%p125) target = $region16
        $region15: #{tpu_custom_call.1} parent=11 // pred_region
          %129 = vsyncadd [#allocation6], 0
          %s130 = sshll.u32 %s1, 4
          %s131 = int_to_ptr.hbm [resolvable:$true] %s130
          %s132 = sshll.u32 [#allocation5], 4
          %s133 = int_to_ptr.vmem [resolvable:$true] %s132
          %138 = dma.hbm_to_vmem [thread:$0]  %s131, 9216, %s133, [#allocation6], 64, 64, 4
        $region16: #{tpu_custom_call.1} parent=11 // pred_fallthru
          _
        // Predicated region
        $region17: #{tpu_custom_call.1} parent=11 // pred_check
          %p139 = pneg %p84
        $region18: #{tpu_custom_call.1} parent=11 // pred_check_branch
          %141 = sbr.rel (%p139) target = $region20
        $region19: #{tpu_custom_call.1} parent=11 // pred_region
          _
        $region20: #{tpu_custom_call.1} parent=11 // pred_fallthru
          _
      $region12: #{tpu_custom_call.1} parent=5 // pred_fallthru
        _
      %p142 = scmp.lt.s32.totalorder %s16, 4
      // Predicated region
      $region21: #{tpu_custom_call.1} parent=5 // pred_check
        %p143 = pneg %p142
      $region22: #{tpu_custom_call.1} parent=5 // pred_check_branch
        %145 = sbr.rel (%p143) target = $region24
      $region23: #{tpu_custom_call.1} parent=5 // pred_region
        // Predicated region
        $region25: #{tpu_custom_call.1} parent=23 // pred_check
          %p146 = pneg %p36
        $region26: #{tpu_custom_call.1} parent=23 // pred_check_branch
          %148 = sbr.rel (%p146) target = $region28
        $region27: #{tpu_custom_call.1} parent=23 // pred_region
          %s149 = sand.u32 %s26, 1
          %s150 = scalar_lea.sflag [#allocation3], %s149
          %s151 = sand.u32 %s26, 1
          %s152 = smul.addr %s151, 192
          %s153 = scalar_lea.vmem [#allocation2], %s152
          %155 = vsyncadd %s150, 0
          %s156 = smul.addr %s16, 24
          %s157 = smul.addr %s156, 8
          %s158 = scalar_lea.hbm %s0, %s157
          %s159 = sshll.u32 %s158, 4
          %s160 = int_to_ptr.hbm [resolvable:$true] %s159
          %s161 = sshll.u32 %s153, 4
          %s162 = int_to_ptr.vmem [resolvable:$true] %s161
          %167 = dma.hbm_to_vmem [thread:$0]  %s160, 3072, %s162, %s150, 128, 128, 8
        $region28: #{tpu_custom_call.1} parent=23 // pred_fallthru
          _
      $region24: #{tpu_custom_call.1} parent=5 // pred_fallthru
        _
      %p168 = scmp.le.s32.totalorder 1, %s16
      %p169 = scmp.lt.s32.totalorder %s16, 5
      %p170 = pnand %p168, %p169
      %p171 = pneg %p170
      // Predicated region
      $region29: #{tpu_custom_call.1} parent=5 // pred_check
        _
      $region30: #{tpu_custom_call.1} parent=5 // pred_check_branch
        %173 = sbr.rel (%p170) target = $region32
      $region31: #{tpu_custom_call.1} parent=5 // pred_region
        %s174 = ssub.s32 %s16, 1
        %s175 = sand.u32 %s29, 1
        %s176 = scalar_lea.sflag [#allocation3], %s175
        %s177 = sand.u32 %s29, 1
        %s178 = smul.addr %s177, 192
        %s179 = scalar_lea.vmem [#allocation2], %s178
        // Predicated region
        $region33: #{tpu_custom_call.1} parent=31 // pred_check
          %p180 = pneg %p42
        $region34: #{tpu_custom_call.1} parent=31 // pred_check_branch
          %182 = sbr.rel (%p180) target = $region36
        $region35: #{tpu_custom_call.1} parent=31 // pred_region
          %184 = dma.done %s176, 3072
        $region36: #{tpu_custom_call.1} parent=31 // pred_fallthru
          _
        // Predicated region
        $region37: #{tpu_custom_call.1} parent=31 // pred_check
          %p185 = pneg %p63
        $region38: #{tpu_custom_call.1} parent=31 // pred_check_branch
          %187 = sbr.rel (%p185) target = $region40
        $region39: #{tpu_custom_call.1} parent=31 // pred_region
          %189 = dma.done [#allocation6], 9216
        $region40: #{tpu_custom_call.1} parent=31 // pred_fallthru
          _
        %s190 = sand.u32 %s29, 1
        %s191 = scalar_lea.sflag [#allocation3], %s190
        %s192 = sand.u32 %s29, 1
        %s193 = smul.addr %s192, 192
        %s194 = scalar_lea.vmem [#allocation2], %s193
        %p195 = pneg %p42
        %p196 = pneg %p39
        %p197 = pneg %p63
        %p198 = pneg %p60
        %p199 = pneg %p84
        %p200 = pneg %p81
        %p201 = pneg %p110
        %p202 = pneg %p107
        %s203 = sand.u32 %s97, 1
        %s204 = scalar_lea.sflag [#allocation4], %s203
        %s205 = sand.u32 %s97, 1
        %s206 = smul.addr %s205, 128
        %s207 = scalar_lea.vmem [#allocation7], %s206
        %v208 = vld [vmem:[%s179 + $0x8] sm:$0xff]
        %v209 = vld [vmem:[%s179 + $0x10] sm:$0xff]
        %v210 = vld [vmem:[%s179 + $0x18] sm:$0xff]
        %v211 = vld [vmem:[%s179 + $0x20] sm:$0xff]
        %v212 = vld [vmem:[%s179 + $0x28] sm:$0xff]
        %v213 = vld [vmem:[%s179 + $0x30] sm:$0xff]
        %v214 = vld [vmem:[%s179 + $0x38] sm:$0xff]
        %v215 = vld [vmem:[%s179 + $0x40] sm:$0xff]
        %v216 = vld [vmem:[%s179 + $0x48] sm:$0xff]
        %v217 = vld [vmem:[%s179 + $0x50] sm:$0xff]
        %v218 = vld [vmem:[%s179 + $0x58] sm:$0xff]
        %v219 = vld [vmem:[%s179 + $0x60] sm:$0xff]
        %v220 = vld [vmem:[%s179 + $0x68] sm:$0xff]
        %v221 = vld [vmem:[%s179 + $0x70] sm:$0xff]
        %v222 = vld [vmem:[%s179 + $0x78] sm:$0xff]
        %v223 = vld [vmem:[%s179 + $0x80] sm:$0xff]
        %v224 = vld [vmem:[%s179 + $0x88] sm:$0xff]
        %v225 = vld [vmem:[%s179 + $0x90] sm:$0xff]
        %v226 = vld [vmem:[%s179 + $0x98] sm:$0xff]
        %v227 = vld [vmem:[%s179 + $0xa0] sm:$0xff]
        %v228 = vld [vmem:[%s179 + $0xa8] sm:$0xff]
        %v229 = vld [vmem:[%s179 + $0xb0] sm:$0xff]
        %v230 = vlaneseq
        %v231 = vshrl.u32 %v230, 7
        %v232 = vadd.s32 %v231, 8
        %v233 = vadd.s32 %v231, 16
        %v234 = vadd.s32 %v231, 24
        %v235 = vadd.s32 %v231, 32
        %v236 = vadd.s32 %v231, 40
        %v237 = vadd.s32 %v231, 48
        %v238 = vadd.s32 %v231, 56
        %v239 = vadd.s32 %v231, 64
        %v240 = vadd.s32 %v231, 72
        %v241 = vadd.s32 %v231, 80
        %v242 = vadd.s32 %v231, 88
        %v243 = vadd.s32 %v231, 96
        %v244 = vadd.s32 %v231, 104
        %v245 = vadd.s32 %v231, 112
        %v246 = vadd.s32 %v231, 120
        %vm247 = vcmp.lt.s32.totalorder %v231, 0
        %v248 = vsub.s32 0, %v231
        %v249 = vsel %vm247, %v248, %v231
        %v250 = vshrl.u32 %v249, 4
        %v251 = vand.u32 %v249, 15
        %v252 = vsub.s32 0, %v251
        %v253 = vsel %vm247, %v252, %v251
        %vm254 = vcmp.lt.s32.totalorder %v232, 0
        %v255 = vsub.s32 0, %v232
        %v256 = vsel %vm254, %v255, %v232
        %v257 = vshrl.u32 %v256, 4
        %v258 = vand.u32 %v256, 15
        %v259 = vsub.s32 0, %v258
        %v260 = vsel %vm254, %v259, %v258
        %vm261 = vcmp.lt.s32.totalorder %v233, 0
        %v262 = vsub.s32 0, %v233
        %v263 = vsel %vm261, %v262, %v233
        %v264 = vshrl.u32 %v263, 4
        %v265 = vand.u32 %v263, 15
        %v266 = vsub.s32 0, %v265
        %v267 = vsel %vm261, %v266, %v265
        %vm268 = vcmp.lt.s32.totalorder %v234, 0
        %v269 = vsub.s32 0, %v234
        %v270 = vsel %vm268, %v269, %v234
        %v271 = vshrl.u32 %v270, 4
        %v272 = vand.u32 %v270, 15
        %v273 = vsub.s32 0, %v272
        %v274 = vsel %vm268, %v273, %v272
        %vm275 = vcmp.lt.s32.totalorder %v235, 0
        %v276 = vsub.s32 0, %v235
        %v277 = vsel %vm275, %v276, %v235
        %v278 = vshrl.u32 %v277, 4
        %v279 = vand.u32 %v277, 15
        %v280 = vsub.s32 0, %v279
        %v281 = vsel %vm275, %v280, %v279
        %vm282 = vcmp.lt.s32.totalorder %v236, 0
        %v283 = vsub.s32 0, %v236
        %v284 = vsel %vm282, %v283, %v236
        %v285 = vshrl.u32 %v284, 4
        %v286 = vand.u32 %v284, 15
        %v287 = vsub.s32 0, %v286
        %v288 = vsel %vm282, %v287, %v286
        %vm289 = vcmp.lt.s32.totalorder %v237, 0
        %v290 = vsub.s32 0, %v237
        %v291 = vsel %vm289, %v290, %v237
        %v292 = vshrl.u32 %v291, 4
        %v293 = vand.u32 %v291, 15
        %v294 = vsub.s32 0, %v293
        %v295 = vsel %vm289, %v294, %v293
        %vm296 = vcmp.lt.s32.totalorder %v238, 0
        %v297 = vsub.s32 0, %v238
        %v298 = vsel %vm296, %v297, %v238
        %v299 = vshrl.u32 %v298, 4
        %v300 = vand.u32 %v298, 15
        %v301 = vsub.s32 0, %v300
        %v302 = vsel %vm296, %v301, %v300
        %vm303 = vcmp.lt.s32.totalorder %v239, 0
        %v304 = vsub.s32 0, %v239
        %v305 = vsel %vm303, %v304, %v239
        %v306 = vshrl.u32 %v305, 4
        %v307 = vand.u32 %v305, 15
        %v308 = vsub.s32 0, %v307
        %v309 = vsel %vm303, %v308, %v307
        %vm310 = vcmp.lt.s32.totalorder %v240, 0
        %v311 = vsub.s32 0, %v240
        %v312 = vsel %vm310, %v311, %v240
        %v313 = vshrl.u32 %v312, 4
        %v314 = vand.u32 %v312, 15
        %v315 = vsub.s32 0, %v314
        %v316 = vsel %vm310, %v315, %v314
        %vm317 = vcmp.lt.s32.totalorder %v241, 0
        %v318 = vsub.s32 0, %v241
        %v319 = vsel %vm317, %v318, %v241
        %v320 = vshrl.u32 %v319, 4
        %v321 = vand.u32 %v319, 15
        %v322 = vsub.s32 0, %v321
        %v323 = vsel %vm317, %v322, %v321
        %vm324 = vcmp.lt.s32.totalorder %v242, 0
        %v325 = vsub.s32 0, %v242
        %v326 = vsel %vm324, %v325, %v242
        %v327 = vshrl.u32 %v326, 4
        %v328 = vand.u32 %v326, 15
        %v329 = vsub.s32 0, %v328
        %v330 = vsel %vm324, %v329, %v328
        %vm331 = vcmp.lt.s32.totalorder %v243, 0
        %v332 = vsub.s32 0, %v243
        %v333 = vsel %vm331, %v332, %v243
        %v334 = vshrl.u32 %v333, 4
        %v335 = vand.u32 %v333, 15
        %v336 = vsub.s32 0, %v335
        %v337 = vsel %vm331, %v336, %v335
        %vm338 = vcmp.lt.s32.totalorder %v244, 0
        %v339 = vsub.s32 0, %v244
        %v340 = vsel %vm338, %v339, %v244
        %v341 = vshrl.u32 %v340, 4
        %v342 = vand.u32 %v340, 15
        %v343 = vsub.s32 0, %v342
        %v344 = vsel %vm338, %v343, %v342
        %vm345 = vcmp.lt.s32.totalorder %v245, 0
        %v346 = vsub.s32 0, %v245
        %v347 = vsel %vm345, %v346, %v245
        %v348 = vshrl.u32 %v347, 4
        %v349 = vand.u32 %v347, 15
        %v350 = vsub.s32 0, %v349
        %v351 = vsel %vm345, %v350, %v349
        %vm352 = vcmp.lt.s32.totalorder %v246, 0
        %v353 = vsub.s32 0, %v246
        %v354 = vsel %vm352, %v353, %v246
        %v355 = vshrl.u32 %v354, 4
        %v356 = vand.u32 %v354, 15
        %v357 = vsub.s32 0, %v356
        %v358 = vsel %vm352, %v357, %v356
        %vm359 = vcmp.ne.s32.totalorder %v253, 0
        %vm360 = vcmp.ne.s32.totalorder %v260, 0
        %vm361 = vcmp.ne.s32.totalorder %v267, 0
        %vm362 = vcmp.ne.s32.totalorder %v274, 0
        %vm363 = vcmp.ne.s32.totalorder %v281, 0
        %vm364 = vcmp.ne.s32.totalorder %v288, 0
        %vm365 = vcmp.ne.s32.totalorder %v295, 0
        %vm366 = vcmp.ne.s32.totalorder %v302, 0
        %vm367 = vcmp.ne.s32.totalorder %v309, 0
        %vm368 = vcmp.ne.s32.totalorder %v316, 0
        %vm369 = vcmp.ne.s32.totalorder %v323, 0
        %vm370 = vcmp.ne.s32.totalorder %v330, 0
        %vm371 = vcmp.ne.s32.totalorder %v337, 0
        %vm372 = vcmp.ne.s32.totalorder %v344, 0
        %vm373 = vcmp.ne.s32.totalorder %v351, 0
        %vm374 = vcmp.ne.s32.totalorder %v358, 0
        %vm375 = vcmp.lt.s32.totalorder %v253, 0
        %vm376 = vcmp.lt.s32.totalorder %v260, 0
        %vm377 = vcmp.lt.s32.totalorder %v267, 0
        %vm378 = vcmp.lt.s32.totalorder %v274, 0
        %vm379 = vcmp.lt.s32.totalorder %v281, 0
        %vm380 = vcmp.lt.s32.totalorder %v288, 0
        %vm381 = vcmp.lt.s32.totalorder %v295, 0
        %vm382 = vcmp.lt.s32.totalorder %v302, 0
        %vm383 = vcmp.lt.s32.totalorder %v309, 0
        %vm384 = vcmp.lt.s32.totalorder %v316, 0
        %vm385 = vcmp.lt.s32.totalorder %v323, 0
        %vm386 = vcmp.lt.s32.totalorder %v330, 0
        %vm387 = vcmp.lt.s32.totalorder %v337, 0
        %vm388 = vcmp.lt.s32.totalorder %v344, 0
        %vm389 = vcmp.lt.s32.totalorder %v351, 0
        %vm390 = vcmp.lt.s32.totalorder %v358, 0
        %vm391 = vmand %vm375, %vm359
        %vm392 = vmand %vm376, %vm360
        %vm393 = vmand %vm377, %vm361
        %vm394 = vmand %vm378, %vm362
        %vm395 = vmand %vm379, %vm363
        %vm396 = vmand %vm380, %vm364
        %vm397 = vmand %vm381, %vm365
        %vm398 = vmand %vm382, %vm366
        %vm399 = vmand %vm383, %vm367
        %vm400 = vmand %vm384, %vm368
        %vm401 = vmand %vm385, %vm369
        %vm402 = vmand %vm386, %vm370
        %vm403 = vmand %vm387, %vm371
        %vm404 = vmand %vm388, %vm372
        %vm405 = vmand %vm389, %vm373
        %vm406 = vmand %vm390, %vm374
        %v407 = vadd.s32 %v253, 16
        %v408 = vadd.s32 %v260, 16
        %v409 = vadd.s32 %v267, 16
        %v410 = vadd.s32 %v274, 16
        %v411 = vadd.s32 %v281, 16
        %v412 = vadd.s32 %v288, 16
        %v413 = vadd.s32 %v295, 16
        %v414 = vadd.s32 %v302, 16
        %v415 = vadd.s32 %v309, 16
        %v416 = vadd.s32 %v316, 16
        %v417 = vadd.s32 %v323, 16
        %v418 = vadd.s32 %v330, 16
        %v419 = vadd.s32 %v337, 16
        %v420 = vadd.s32 %v344, 16
        %v421 = vadd.s32 %v351, 16
        %v422 = vadd.s32 %v358, 16
        %v423 = vsel %vm391, %v407, %v253
        %v424 = vsel %vm392, %v408, %v260
        %v425 = vsel %vm393, %v409, %v267
        %v426 = vsel %vm394, %v410, %v274
        %v427 = vsel %vm395, %v411, %v281
        %v428 = vsel %vm396, %v412, %v288
        %v429 = vsel %vm397, %v413, %v295
        %v430 = vsel %vm398, %v414, %v302
        %v431 = vsel %vm399, %v415, %v309
        %v432 = vsel %vm400, %v416, %v316
        %v433 = vsel %vm401, %v417, %v323
        %v434 = vsel %vm402, %v418, %v330
        %v435 = vsel %vm403, %v419, %v337
        %v436 = vsel %vm404, %v420, %v344
        %v437 = vsel %vm405, %v421, %v351
        %v438 = vsel %vm406, %v422, %v358
        %vm439 = vcmp.eq.s32.totalorder %v423, 0
        %vm440 = vcmp.eq.s32.totalorder %v424, 0
        %vm441 = vcmp.eq.s32.totalorder %v425, 0
        %vm442 = vcmp.eq.s32.totalorder %v426, 0
        %vm443 = vcmp.eq.s32.totalorder %v427, 0
        %vm444 = vcmp.eq.s32.totalorder %v428, 0
        %vm445 = vcmp.eq.s32.totalorder %v429, 0
        %vm446 = vcmp.eq.s32.totalorder %v430, 0
        %vm447 = vcmp.eq.s32.totalorder %v431, 0
        %vm448 = vcmp.eq.s32.totalorder %v432, 0
        %vm449 = vcmp.eq.s32.totalorder %v433, 0
        %vm450 = vcmp.eq.s32.totalorder %v434, 0
        %vm451 = vcmp.eq.s32.totalorder %v435, 0
        %vm452 = vcmp.eq.s32.totalorder %v436, 0
        %vm453 = vcmp.eq.s32.totalorder %v437, 0
        %vm454 = vcmp.eq.s32.totalorder %v438, 0
        %vm472 = vcmask 1040384
        %v473 = vrot.slane %v208, 7
        %v474 = vrot.slane %v209, 7
        %v475 = vsel %vm472, %v473, %v474
        %v476 = vrot.slane %v210, 7
        %v477 = vsel %vm472, %v474, %v476
        %v478 = vrot.slane %v211, 7
        %v479 = vsel %vm472, %v476, %v478
        %v480 = vrot.slane %v212, 7
        %v481 = vsel %vm472, %v478, %v480
        %v482 = vrot.slane %v213, 7
        %v483 = vsel %vm472, %v480, %v482
        %v484 = vrot.slane %v214, 7
        %v485 = vsel %vm472, %v482, %v484
        %v486 = vrot.slane %v215, 7
        %v487 = vsel %vm472, %v484, %v486
        %v488 = vrot.slane %v216, 7
        %v489 = vsel %vm472, %v486, %v488
        %v490 = vrot.slane %v217, 7
        %v491 = vsel %vm472, %v488, %v490
        %v492 = vrot.slane %v218, 7
        %v493 = vsel %vm472, %v490, %v492
        %v494 = vrot.slane %v219, 7
        %v495 = vsel %vm472, %v492, %v494
        %v496 = vrot.slane %v220, 7
        %v497 = vsel %vm472, %v494, %v496
        %v498 = vrot.slane %v221, 7
        %v499 = vsel %vm472, %v496, %v498
        %v500 = vrot.slane %v222, 7
        %v501 = vsel %vm472, %v498, %v500
        %v502 = vrot.slane %v223, 7
        %v503 = vsel %vm472, %v500, %v502
        %v504 = vrot.slane %v224, 7
        %v505 = vsel %vm472, %v502, %v504
        %v522 = vsel %vm439, 0.0, %v475
        %v523 = vsel %vm440, 0.0, %v477
        %v524 = vsel %vm441, 0.0, %v479
        %v525 = vsel %vm442, 0.0, %v481
        %v526 = vsel %vm443, 0.0, %v483
        %v527 = vsel %vm444, 0.0, %v485
        %v528 = vsel %vm445, 0.0, %v487
        %v529 = vsel %vm446, 0.0, %v489
        %v530 = vsel %vm447, 0.0, %v491
        %v531 = vsel %vm448, 0.0, %v493
        %v532 = vsel %vm449, 0.0, %v495
        %v533 = vsel %vm450, 0.0, %v497
        %v534 = vsel %vm451, 0.0, %v499
        %v535 = vsel %vm452, 0.0, %v501
        %v536 = vsel %vm453, 0.0, %v503
        %v537 = vsel %vm454, 0.0, %v505
        %vm538 = vcmp.eq.s32.totalorder %v423, 15
        %vm539 = vcmp.eq.s32.totalorder %v424, 15
        %vm540 = vcmp.eq.s32.totalorder %v425, 15
        %vm541 = vcmp.eq.s32.totalorder %v426, 15
        %vm542 = vcmp.eq.s32.totalorder %v427, 15
        %vm543 = vcmp.eq.s32.totalorder %v428, 15
        %vm544 = vcmp.eq.s32.totalorder %v429, 15
        %vm545 = vcmp.eq.s32.totalorder %v430, 15
        %vm546 = vcmp.eq.s32.totalorder %v431, 15
        %vm547 = vcmp.eq.s32.totalorder %v432, 15
        %vm548 = vcmp.eq.s32.totalorder %v433, 15
        %vm549 = vcmp.eq.s32.totalorder %v434, 15
        %vm550 = vcmp.eq.s32.totalorder %v435, 15
        %vm551 = vcmp.eq.s32.totalorder %v436, 15
        %vm552 = vcmp.eq.s32.totalorder %v437, 15
        %vm553 = vcmp.eq.s32.totalorder %v438, 15
        %vm555 = vcmask 1046528
        %v556 = vrot.slane %v209, 1
        %v557 = vrot.slane %v210, 1
        %v558 = vsel %vm555, %v556, %v557
        %v559 = vrot.slane %v211, 1
        %v560 = vsel %vm555, %v557, %v559
        %v561 = vrot.slane %v212, 1
        %v562 = vsel %vm555, %v559, %v561
        %v563 = vrot.slane %v213, 1
        %v564 = vsel %vm555, %v561, %v563
        %v565 = vrot.slane %v214, 1
        %v566 = vsel %vm555, %v563, %v565
        %v567 = vrot.slane %v215, 1
        %v568 = vsel %vm555, %v565, %v567
        %v569 = vrot.slane %v216, 1
        %v570 = vsel %vm555, %v567, %v569
        %v571 = vrot.slane %v217, 1
        %v572 = vsel %vm555, %v569, %v571
        %v573 = vrot.slane %v218, 1
        %v574 = vsel %vm555, %v571, %v573
        %v575 = vrot.slane %v219, 1
        %v576 = vsel %vm555, %v573, %v575
        %v577 = vrot.slane %v220, 1
        %v578 = vsel %vm555, %v575, %v577
        %v579 = vrot.slane %v221, 1
        %v580 = vsel %vm555, %v577, %v579
        %v581 = vrot.slane %v222, 1
        %v582 = vsel %vm555, %v579, %v581
        %v583 = vrot.slane %v223, 1
        %v584 = vsel %vm555, %v581, %v583
        %v585 = vrot.slane %v224, 1
        %v586 = vsel %vm555, %v583, %v585
        %v587 = vrot.slane %v225, 1
        %v588 = vsel %vm555, %v585, %v587
        %v605 = vsel %vm538, 0.0, %v558
        %v606 = vsel %vm539, 0.0, %v560
        %v607 = vsel %vm540, 0.0, %v562
        %v608 = vsel %vm541, 0.0, %v564
        %v609 = vsel %vm542, 0.0, %v566
        %v610 = vsel %vm543, 0.0, %v568
        %v611 = vsel %vm544, 0.0, %v570
        %v612 = vsel %vm545, 0.0, %v572
        %v613 = vsel %vm546, 0.0, %v574
        %v614 = vsel %vm547, 0.0, %v576
        %v615 = vsel %vm548, 0.0, %v578
        %v616 = vsel %vm549, 0.0, %v580
        %v617 = vsel %vm550, 0.0, %v582
        %v618 = vsel %vm551, 0.0, %v584
        %v619 = vsel %vm552, 0.0, %v586
        %v620 = vsel %vm553, 0.0, %v588
        %v622 = vrot.slane %v225, 7
        %v623 = vsel %vm472, %v504, %v622
        %v624 = vrot.slane %v226, 7
        %v625 = vsel %vm472, %v622, %v624
        %v628 = vsel %vm439, 0.0, %v479
        %v629 = vsel %vm440, 0.0, %v481
        %v630 = vsel %vm441, 0.0, %v483
        %v631 = vsel %vm442, 0.0, %v485
        %v632 = vsel %vm443, 0.0, %v487
        %v633 = vsel %vm444, 0.0, %v489
        %v634 = vsel %vm445, 0.0, %v491
        %v635 = vsel %vm446, 0.0, %v493
        %v636 = vsel %vm447, 0.0, %v495
        %v637 = vsel %vm448, 0.0, %v497
        %v638 = vsel %vm449, 0.0, %v499
        %v639 = vsel %vm450, 0.0, %v501
        %v640 = vsel %vm451, 0.0, %v503
        %v641 = vsel %vm452, 0.0, %v505
        %v642 = vsel %vm453, 0.0, %v623
        %v643 = vsel %vm454, 0.0, %v625
        %v645 = vrot.slane %v226, 1
        %v646 = vsel %vm555, %v587, %v645
        %v647 = vrot.slane %v227, 1
        %v648 = vsel %vm555, %v645, %v647
        %v651 = vsel %vm538, 0.0, %v562
        %v652 = vsel %vm539, 0.0, %v564
        %v653 = vsel %vm540, 0.0, %v566
        %v654 = vsel %vm541, 0.0, %v568
        %v655 = vsel %vm542, 0.0, %v570
        %v656 = vsel %vm543, 0.0, %v572
        %v657 = vsel %vm544, 0.0, %v574
        %v658 = vsel %vm545, 0.0, %v576
        %v659 = vsel %vm546, 0.0, %v578
        %v660 = vsel %vm547, 0.0, %v580
        %v661 = vsel %vm548, 0.0, %v582
        %v662 = vsel %vm549, 0.0, %v584
        %v663 = vsel %vm550, 0.0, %v586
        %v664 = vsel %vm551, 0.0, %v588
        %v665 = vsel %vm552, 0.0, %v646
        %v666 = vsel %vm553, 0.0, %v648
        %v668 = vrot.slane %v227, 7
        %v669 = vsel %vm472, %v624, %v668
        %v670 = vrot.slane %v228, 7
        %v671 = vsel %vm472, %v668, %v670
        %v674 = vsel %vm439, 0.0, %v483
        %v675 = vsel %vm440, 0.0, %v485
        %v676 = vsel %vm441, 0.0, %v487
        %v677 = vsel %vm442, 0.0, %v489
        %v678 = vsel %vm443, 0.0, %v491
        %v679 = vsel %vm444, 0.0, %v493
        %v680 = vsel %vm445, 0.0, %v495
        %v681 = vsel %vm446, 0.0, %v497
        %v682 = vsel %vm447, 0.0, %v499
        %v683 = vsel %vm448, 0.0, %v501
        %v684 = vsel %vm449, 0.0, %v503
        %v685 = vsel %vm450, 0.0, %v505
        %v686 = vsel %vm451, 0.0, %v623
        %v687 = vsel %vm452, 0.0, %v625
        %v688 = vsel %vm453, 0.0, %v669
        %v689 = vsel %vm454, 0.0, %v671
        %v691 = vrot.slane %v228, 1
        %v692 = vsel %vm555, %v647, %v691
        %v693 = vrot.slane %v229, 1
        %v694 = vsel %vm555, %v691, %v693
        %v697 = vsel %vm538, 0.0, %v566
        %v698 = vsel %vm539, 0.0, %v568
        %v699 = vsel %vm540, 0.0, %v570
        %v700 = vsel %vm541, 0.0, %v572
        %v701 = vsel %vm542, 0.0, %v574
        %v702 = vsel %vm543, 0.0, %v576
        %v703 = vsel %vm544, 0.0, %v578
        %v704 = vsel %vm545, 0.0, %v580
        %v705 = vsel %vm546, 0.0, %v582
        %v706 = vsel %vm547, 0.0, %v584
        %v707 = vsel %vm548, 0.0, %v586
        %v708 = vsel %vm549, 0.0, %v588
        %v709 = vsel %vm550, 0.0, %v646
        %v710 = vsel %vm551, 0.0, %v648
        %v711 = vsel %vm552, 0.0, %v692
        %v712 = vsel %vm553, 0.0, %v694
        %v713 = vpack.c.bf16 %v523, %v522
        %v714 = vpack.c.bf16 %v210, %v209
        %v715 = vpack.c.bf16 %v606, %v605
        %v716 = vpack.c.bf16 %v629, %v628
        %v717 = vpack.c.bf16 %v212, %v211
        %v718 = vpack.c.bf16 %v652, %v651
        %v719 = vpack.c.bf16 %v675, %v674
        %v720 = vpack.c.bf16 %v214, %v213
        %v721 = vpack.c.bf16 %v698, %v697
        %v722 = vpack.c.bf16 %v525, %v524
        %v723 = vpack.c.bf16 %v608, %v607
        %v724 = vpack.c.bf16 %v631, %v630
        %v725 = vpack.c.bf16 %v654, %v653
        %v726 = vpack.c.bf16 %v677, %v676
        %v727 = vpack.c.bf16 %v216, %v215
        %v728 = vpack.c.bf16 %v700, %v699
        %v729 = vpack.c.bf16 %v527, %v526
        %v730 = vpack.c.bf16 %v610, %v609
        %v731 = vpack.c.bf16 %v633, %v632
        %v732 = vpack.c.bf16 %v656, %v655
        %v733 = vpack.c.bf16 %v679, %v678
        %v734 = vpack.c.bf16 %v218, %v217
        %v735 = vpack.c.bf16 %v702, %v701
        %v736 = vpack.c.bf16 %v529, %v528
        %v737 = vpack.c.bf16 %v612, %v611
        %v738 = vpack.c.bf16 %v635, %v634
        %v739 = vpack.c.bf16 %v658, %v657
        %v740 = vpack.c.bf16 %v681, %v680
        %v741 = vpack.c.bf16 %v220, %v219
        %v742 = vpack.c.bf16 %v704, %v703
        %v743 = vpack.c.bf16 %v531, %v530
        %v744 = vpack.c.bf16 %v614, %v613
        %v745 = vpack.c.bf16 %v637, %v636
        %v746 = vpack.c.bf16 %v660, %v659
        %v747 = vpack.c.bf16 %v683, %v682
        %v748 = vpack.c.bf16 %v222, %v221
        %v749 = vpack.c.bf16 %v706, %v705
        %v750 = vpack.c.bf16 %v533, %v532
        %v751 = vpack.c.bf16 %v616, %v615
        %v752 = vpack.c.bf16 %v639, %v638
        %v753 = vpack.c.bf16 %v662, %v661
        %v754 = vpack.c.bf16 %v685, %v684
        %v755 = vpack.c.bf16 %v224, %v223
        %v756 = vpack.c.bf16 %v708, %v707
        %v757 = vpack.c.bf16 %v535, %v534
        %v758 = vpack.c.bf16 %v618, %v617
        %v759 = vpack.c.bf16 %v641, %v640
        %v760 = vpack.c.bf16 %v664, %v663
        %v761 = vpack.c.bf16 %v687, %v686
        %v762 = vpack.c.bf16 %v226, %v225
        %v763 = vpack.c.bf16 %v710, %v709
        %v764 = vpack.c.bf16 %v537, %v536
        %v765 = vpack.c.bf16 %v620, %v619
        %v766 = vpack.c.bf16 %v643, %v642
        %v767 = vpack.c.bf16 %v666, %v665
        %v768 = vpack.c.bf16 %v689, %v688
        %v769 = vpack.c.bf16 %v228, %v227
        %v770 = vpack.c.bf16 %v712, %v711
        %v771 = vld [vmem:[#allocation5] sm:$0xf]
        %v772 = vld [vmem:[#allocation5 + $0x4] sm:$0xf]
        %v773 = vld [vmem:[#allocation5 + $0x8] sm:$0xf]
        %v774 = vld [vmem:[#allocation5 + $0xc] sm:$0xf]
        %v775 = vld [vmem:[#allocation5 + $0x10] sm:$0xf]
        %v776 = vld [vmem:[#allocation5 + $0x14] sm:$0xf]
        %v777 = vld [vmem:[#allocation5 + $0x18] sm:$0xf]
        %v778 = vld [vmem:[#allocation5 + $0x1c] sm:$0xf]
        %v779 = vld [vmem:[#allocation5 + $0x20] sm:$0xf]
        %v780 = vld [vmem:[#allocation5 + $0x24] sm:$0xf]
        %v781 = vld [vmem:[#allocation5 + $0x28] sm:$0xf]
        %v782 = vld [vmem:[#allocation5 + $0x2c] sm:$0xf]
        %v783 = vld [vmem:[#allocation5 + $0x30] sm:$0xf]
        %v784 = vld [vmem:[#allocation5 + $0x34] sm:$0xf]
        %v785 = vld [vmem:[#allocation5 + $0x38] sm:$0xf]
        %v786 = vld [vmem:[#allocation5 + $0x3c] sm:$0xf]
        %v787 = vld [vmem:[#allocation5 + $0x40] sm:$0xf]
        %v788 = vld [vmem:[#allocation5 + $0x44] sm:$0xf]
        %v789 = vld [vmem:[#allocation5 + $0x48] sm:$0xf]
        %v790 = vld [vmem:[#allocation5 + $0x4c] sm:$0xf]
        %v791 = vld [vmem:[#allocation5 + $0x50] sm:$0xf]
        %v792 = vld [vmem:[#allocation5 + $0x54] sm:$0xf]
        %v793 = vld [vmem:[#allocation5 + $0x58] sm:$0xf]
        %v794 = vld [vmem:[#allocation5 + $0x5c] sm:$0xf]
        %v795 = vld [vmem:[#allocation5 + $0x60] sm:$0xf]
        %v796 = vld [vmem:[#allocation5 + $0x64] sm:$0xf]
        %v797 = vld [vmem:[#allocation5 + $0x68] sm:$0xf]
        %v798 = vld [vmem:[#allocation5 + $0x6c] sm:$0xf]
        %v799 = vld [vmem:[#allocation5 + $0x70] sm:$0xf]
        %v800 = vld [vmem:[#allocation5 + $0x74] sm:$0xf]
        %v801 = vld [vmem:[#allocation5 + $0x78] sm:$0xf]
        %v802 = vld [vmem:[#allocation5 + $0x7c] sm:$0xf]
        %v803 = vld [vmem:[#allocation5 + $0x80] sm:$0xf]
        %v804 = vld [vmem:[#allocation5 + $0x84] sm:$0xf]
        %v805 = vld [vmem:[#allocation5 + $0x88] sm:$0xf]
        %v806 = vld [vmem:[#allocation5 + $0x8c] sm:$0xf]
        %v807 = vld [vmem:[#allocation5 + $0x90] sm:$0xf]
        %v808 = vld [vmem:[#allocation5 + $0x94] sm:$0xf]
        %v809 = vld [vmem:[#allocation5 + $0x98] sm:$0xf]
        %v810 = vld [vmem:[#allocation5 + $0x9c] sm:$0xf]
        %v811 = vld [vmem:[#allocation5 + $0xa0] sm:$0xf]
        %v812 = vld [vmem:[#allocation5 + $0xa4] sm:$0xf]
        %v813 = vld [vmem:[#allocation5 + $0xa8] sm:$0xf]
        %v814 = vld [vmem:[#allocation5 + $0xac] sm:$0xf]
        %v815 = vld [vmem:[#allocation5 + $0xb0] sm:$0xf]
        %v816 = vld [vmem:[#allocation5 + $0xb4] sm:$0xf]
        %v817 = vld [vmem:[#allocation5 + $0xb8] sm:$0xf]
        %v818 = vld [vmem:[#allocation5 + $0xbc] sm:$0xf]
        %v819 = vld [vmem:[#allocation5 + $0xc0] sm:$0xf]
        %v820 = vld [vmem:[#allocation5 + $0xc4] sm:$0xf]
        %v821 = vld [vmem:[#allocation5 + $0xc8] sm:$0xf]
        %v822 = vld [vmem:[#allocation5 + $0xcc] sm:$0xf]
        %v823 = vld [vmem:[#allocation5 + $0xd0] sm:$0xf]
        %v824 = vld [vmem:[#allocation5 + $0xd4] sm:$0xf]
        %v825 = vld [vmem:[#allocation5 + $0xd8] sm:$0xf]
        %v826 = vld [vmem:[#allocation5 + $0xdc] sm:$0xf]
        %v827 = vld [vmem:[#allocation5 + $0xe0] sm:$0xf]
        %v828 = vld [vmem:[#allocation5 + $0xe4] sm:$0xf]
        %v829 = vld [vmem:[#allocation5 + $0xe8] sm:$0xf]
        %v830 = vld [vmem:[#allocation5 + $0xec] sm:$0xf]
        %v831 = vld [vmem:[#allocation5 + $0xf0] sm:$0xf]
        %v832 = vld [vmem:[#allocation5 + $0xf4] sm:$0xf]
        %v833 = vld [vmem:[#allocation5 + $0xf8] sm:$0xf]
        %v834 = vld [vmem:[#allocation5 + $0xfc] sm:$0xf]
        %v835 = vld [vmem:[#allocation5 + $0x100] sm:$0xf]
        %v836 = vld [vmem:[#allocation5 + $0x104] sm:$0xf]
        %v837 = vld [vmem:[#allocation5 + $0x108] sm:$0xf]
        %v838 = vld [vmem:[#allocation5 + $0x10c] sm:$0xf]
        %v839 = vld [vmem:[#allocation5 + $0x110] sm:$0xf]
        %v840 = vld [vmem:[#allocation5 + $0x114] sm:$0xf]
        %v841 = vld [vmem:[#allocation5 + $0x118] sm:$0xf]
        %v842 = vld [vmem:[#allocation5 + $0x11c] sm:$0xf]
        %v843 = vld [vmem:[#allocation5 + $0x120] sm:$0xf]
        %v844 = vld [vmem:[#allocation5 + $0x124] sm:$0xf]
        %v845 = vld [vmem:[#allocation5 + $0x128] sm:$0xf]
        %v846 = vld [vmem:[#allocation5 + $0x12c] sm:$0xf]
        %v847 = vld [vmem:[#allocation5 + $0x130] sm:$0xf]
        %v848 = vld [vmem:[#allocation5 + $0x134] sm:$0xf]
        %v849 = vld [vmem:[#allocation5 + $0x138] sm:$0xf]
        %v850 = vld [vmem:[#allocation5 + $0x13c] sm:$0xf]
        %v851 = vld [vmem:[#allocation5 + $0x140] sm:$0xf]
        %v852 = vld [vmem:[#allocation5 + $0x144] sm:$0xf]
        %v853 = vld [vmem:[#allocation5 + $0x148] sm:$0xf]
        %v854 = vld [vmem:[#allocation5 + $0x14c] sm:$0xf]
        %v855 = vld [vmem:[#allocation5 + $0x150] sm:$0xf]
        %v856 = vld [vmem:[#allocation5 + $0x154] sm:$0xf]
        %v857 = vld [vmem:[#allocation5 + $0x158] sm:$0xf]
        %v858 = vld [vmem:[#allocation5 + $0x15c] sm:$0xf]
        %v859 = vld [vmem:[#allocation5 + $0x160] sm:$0xf]
        %v860 = vld [vmem:[#allocation5 + $0x164] sm:$0xf]
        %v861 = vld [vmem:[#allocation5 + $0x168] sm:$0xf]
        %v862 = vld [vmem:[#allocation5 + $0x16c] sm:$0xf]
        %v863 = vld [vmem:[#allocation5 + $0x170] sm:$0xf]
        %v864 = vld [vmem:[#allocation5 + $0x174] sm:$0xf]
        %v865 = vld [vmem:[#allocation5 + $0x178] sm:$0xf]
        %v866 = vld [vmem:[#allocation5 + $0x17c] sm:$0xf]
        %v867 = vld [vmem:[#allocation5 + $0x180] sm:$0xf]
        %v868 = vld [vmem:[#allocation5 + $0x184] sm:$0xf]
        %v869 = vld [vmem:[#allocation5 + $0x188] sm:$0xf]
        %v870 = vld [vmem:[#allocation5 + $0x18c] sm:$0xf]
        %v871 = vld [vmem:[#allocation5 + $0x190] sm:$0xf]
        %v872 = vld [vmem:[#allocation5 + $0x194] sm:$0xf]
        %v873 = vld [vmem:[#allocation5 + $0x198] sm:$0xf]
        %v874 = vld [vmem:[#allocation5 + $0x19c] sm:$0xf]
        %v875 = vld [vmem:[#allocation5 + $0x1a0] sm:$0xf]
        %v876 = vld [vmem:[#allocation5 + $0x1a4] sm:$0xf]
        %v877 = vld [vmem:[#allocation5 + $0x1a8] sm:$0xf]
        %v878 = vld [vmem:[#allocation5 + $0x1ac] sm:$0xf]
        %v879 = vld [vmem:[#allocation5 + $0x1b0] sm:$0xf]
        %v880 = vld [vmem:[#allocation5 + $0x1b4] sm:$0xf]
        %v881 = vld [vmem:[#allocation5 + $0x1b8] sm:$0xf]
        %v882 = vld [vmem:[#allocation5 + $0x1bc] sm:$0xf]
        %v883 = vld [vmem:[#allocation5 + $0x1c0] sm:$0xf]
        %v884 = vld [vmem:[#allocation5 + $0x1c4] sm:$0xf]
        %v885 = vld [vmem:[#allocation5 + $0x1c8] sm:$0xf]
        %v886 = vld [vmem:[#allocation5 + $0x1cc] sm:$0xf]
        %v887 = vld [vmem:[#allocation5 + $0x1d0] sm:$0xf]
        %v888 = vld [vmem:[#allocation5 + $0x1d4] sm:$0xf]
        %v889 = vld [vmem:[#allocation5 + $0x1d8] sm:$0xf]
        %v890 = vld [vmem:[#allocation5 + $0x1dc] sm:$0xf]
        %v891 = vld [vmem:[#allocation5 + $0x1e0] sm:$0xf]
        %v892 = vld [vmem:[#allocation5 + $0x1e4] sm:$0xf]
        %v893 = vld [vmem:[#allocation5 + $0x1e8] sm:$0xf]
        %v894 = vld [vmem:[#allocation5 + $0x1ec] sm:$0xf]
        %v895 = vld [vmem:[#allocation5 + $0x1f0] sm:$0xf]
        %v896 = vld [vmem:[#allocation5 + $0x1f4] sm:$0xf]
        %v897 = vld [vmem:[#allocation5 + $0x1f8] sm:$0xf]
        %v898 = vld [vmem:[#allocation5 + $0x1fc] sm:$0xf]
        %v899 = vld [vmem:[#allocation5 + $0x200] sm:$0xf]
        %v900 = vld [vmem:[#allocation5 + $0x204] sm:$0xf]
        %v901 = vld [vmem:[#allocation5 + $0x208] sm:$0xf]
        %v902 = vld [vmem:[#allocation5 + $0x20c] sm:$0xf]
        %v903 = vld [vmem:[#allocation5 + $0x210] sm:$0xf]
        %v904 = vld [vmem:[#allocation5 + $0x214] sm:$0xf]
        %v905 = vld [vmem:[#allocation5 + $0x218] sm:$0xf]
        %v906 = vld [vmem:[#allocation5 + $0x21c] sm:$0xf]
        %v907 = vld [vmem:[#allocation5 + $0x220] sm:$0xf]
        %v908 = vld [vmem:[#allocation5 + $0x224] sm:$0xf]
        %v909 = vld [vmem:[#allocation5 + $0x228] sm:$0xf]
        %v910 = vld [vmem:[#allocation5 + $0x22c] sm:$0xf]
        %v911 = vld [vmem:[#allocation5 + $0x230] sm:$0xf]
        %v912 = vld [vmem:[#allocation5 + $0x234] sm:$0xf]
        %v913 = vld [vmem:[#allocation5 + $0x238] sm:$0xf]
        %v914 = vld [vmem:[#allocation5 + $0x23c] sm:$0xf]
        %v915 = vld [vmem:[%s2] sm:$0x1]
        %v917 = vperm.slane %v915, 0
        %v1063 = vunpack.c.l.b16 %v771
        %v1064 = vunpack.c.l.b16 %v772
        %v1065 = vunpack.c.l.b16 %v773
        %v1066 = vunpack.c.l.b16 %v774
        %v1067 = vunpack.c.l.b16 %v775
        %v1068 = vunpack.c.l.b16 %v776
        %v1069 = vunpack.c.l.b16 %v777
        %v1070 = vunpack.c.l.b16 %v778
        %v1071 = vunpack.c.l.b16 %v779
        %v1072 = vunpack.c.l.b16 %v780
        %v1073 = vunpack.c.l.b16 %v781
        %v1074 = vunpack.c.l.b16 %v782
        %v1075 = vunpack.c.l.b16 %v783
        %v1076 = vunpack.c.l.b16 %v784
        %v1077 = vunpack.c.l.b16 %v785
        %v1078 = vunpack.c.l.b16 %v786
        %v1079 = vunpack.c.l.b16 %v787
        %v1080 = vunpack.c.l.b16 %v788
        %v1081 = vunpack.c.l.b16 %v789
        %v1082 = vunpack.c.l.b16 %v790
        %v1083 = vunpack.c.l.b16 %v791
        %v1084 = vunpack.c.l.b16 %v792
        %v1085 = vunpack.c.l.b16 %v793
        %v1086 = vunpack.c.l.b16 %v794
        %v1087 = vunpack.c.l.b16 %v795
        %v1088 = vunpack.c.l.b16 %v796
        %v1089 = vunpack.c.l.b16 %v797
        %v1090 = vunpack.c.l.b16 %v798
        %v1091 = vunpack.c.l.b16 %v799
        %v1092 = vunpack.c.l.b16 %v800
        %v1093 = vunpack.c.l.b16 %v801
        %v1094 = vunpack.c.l.b16 %v802
        %v1095 = vunpack.c.l.b16 %v803
        %v1096 = vunpack.c.l.b16 %v804
        %v1097 = vunpack.c.l.b16 %v805
        %v1098 = vunpack.c.l.b16 %v806
        %v1099 = vunpack.c.l.b16 %v807
        %v1100 = vunpack.c.l.b16 %v808
        %v1101 = vunpack.c.l.b16 %v809
        %v1102 = vunpack.c.l.b16 %v810
        %v1103 = vunpack.c.l.b16 %v811
        %v1104 = vunpack.c.l.b16 %v812
        %v1105 = vunpack.c.l.b16 %v813
        %v1106 = vunpack.c.l.b16 %v814
        %v1107 = vunpack.c.l.b16 %v815
        %v1108 = vunpack.c.l.b16 %v816
        %v1109 = vunpack.c.l.b16 %v817
        %v1110 = vunpack.c.l.b16 %v818
        %v1111 = vunpack.c.l.b16 %v819
        %v1112 = vunpack.c.l.b16 %v820
        %v1113 = vunpack.c.l.b16 %v821
        %v1114 = vunpack.c.l.b16 %v822
        %v1115 = vunpack.c.l.b16 %v823
        %v1116 = vunpack.c.l.b16 %v824
        %v1117 = vunpack.c.l.b16 %v825
        %v1118 = vunpack.c.l.b16 %v826
        %v1119 = vunpack.c.l.b16 %v827
        %v1120 = vunpack.c.l.b16 %v828
        %v1121 = vunpack.c.l.b16 %v829
        %v1122 = vunpack.c.l.b16 %v830
        %v1123 = vunpack.c.l.b16 %v831
        %v1124 = vunpack.c.l.b16 %v832
        %v1125 = vunpack.c.l.b16 %v833
        %v1126 = vunpack.c.l.b16 %v834
        %v1127 = vunpack.c.l.b16 %v835
        %v1128 = vunpack.c.l.b16 %v836
        %v1129 = vunpack.c.l.b16 %v837
        %v1130 = vunpack.c.l.b16 %v838
        %v1131 = vunpack.c.l.b16 %v839
        %v1132 = vunpack.c.l.b16 %v840
        %v1133 = vunpack.c.l.b16 %v841
        %v1134 = vunpack.c.l.b16 %v842
        %v1135 = vunpack.c.l.b16 %v843
        %v1136 = vunpack.c.l.b16 %v844
        %v1137 = vunpack.c.l.b16 %v845
        %v1138 = vunpack.c.l.b16 %v846
        %v1139 = vunpack.c.l.b16 %v847
        %v1140 = vunpack.c.l.b16 %v848
        %v1141 = vunpack.c.l.b16 %v849
        %v1142 = vunpack.c.l.b16 %v850
        %v1143 = vunpack.c.l.b16 %v851
        %v1144 = vunpack.c.l.b16 %v852
        %v1145 = vunpack.c.l.b16 %v853
        %v1146 = vunpack.c.l.b16 %v854
        %v1147 = vunpack.c.l.b16 %v855
        %v1148 = vunpack.c.l.b16 %v856
        %v1149 = vunpack.c.l.b16 %v857
        %v1150 = vunpack.c.l.b16 %v858
        %v1151 = vunpack.c.l.b16 %v859
        %v1152 = vunpack.c.l.b16 %v860
        %v1153 = vunpack.c.l.b16 %v861
        %v1154 = vunpack.c.l.b16 %v862
        %v1155 = vunpack.c.l.b16 %v863
        %v1156 = vunpack.c.l.b16 %v864
        %v1157 = vunpack.c.l.b16 %v865
        %v1158 = vunpack.c.l.b16 %v866
        %v1159 = vunpack.c.l.b16 %v867
        %v1160 = vunpack.c.l.b16 %v868
        %v1161 = vunpack.c.l.b16 %v869
        %v1162 = vunpack.c.l.b16 %v870
        %v1163 = vunpack.c.l.b16 %v871
        %v1164 = vunpack.c.l.b16 %v872
        %v1165 = vunpack.c.l.b16 %v873
        %v1166 = vunpack.c.l.b16 %v874
        %v1167 = vunpack.c.l.b16 %v875
        %v1168 = vunpack.c.l.b16 %v876
        %v1169 = vunpack.c.l.b16 %v877
        %v1170 = vunpack.c.l.b16 %v878
        %v1171 = vunpack.c.l.b16 %v879
        %v1172 = vunpack.c.l.b16 %v880
        %v1173 = vunpack.c.l.b16 %v881
        %v1174 = vunpack.c.l.b16 %v882
        %v1175 = vunpack.c.l.b16 %v883
        %v1176 = vunpack.c.l.b16 %v884
        %v1177 = vunpack.c.l.b16 %v885
        %v1178 = vunpack.c.l.b16 %v886
        %v1179 = vunpack.c.l.b16 %v887
        %v1180 = vunpack.c.l.b16 %v888
        %v1181 = vunpack.c.l.b16 %v889
        %v1182 = vunpack.c.l.b16 %v890
        %v1183 = vunpack.c.l.b16 %v891
        %v1184 = vunpack.c.l.b16 %v892
        %v1185 = vunpack.c.l.b16 %v893
        %v1186 = vunpack.c.l.b16 %v894
        %v1187 = vunpack.c.l.b16 %v895
        %v1188 = vunpack.c.l.b16 %v896
        %v1189 = vunpack.c.l.b16 %v897
        %v1190 = vunpack.c.l.b16 %v898
        %v1191 = vunpack.c.l.b16 %v899
        %v1192 = vunpack.c.l.b16 %v900
        %v1193 = vunpack.c.l.b16 %v901
        %v1194 = vunpack.c.l.b16 %v902
        %v1195 = vunpack.c.l.b16 %v903
        %v1196 = vunpack.c.l.b16 %v904
        %v1197 = vunpack.c.l.b16 %v905
        %v1198 = vunpack.c.l.b16 %v906
        %v1199 = vunpack.c.l.b16 %v907
        %v1200 = vunpack.c.l.b16 %v908
        %v1201 = vunpack.c.l.b16 %v909
        %v1202 = vunpack.c.l.b16 %v910
        %v1203 = vunpack.c.l.b16 %v911
        %v1204 = vunpack.c.l.b16 %v912
        %v1205 = vunpack.c.l.b16 %v913
        %v1206 = vunpack.c.l.b16 %v914
        %v1207 = vpack.c.b16 %v1064, %v1063
        %v1208 = vpack.c.b16 %v1066, %v1065
        %v1209 = vpack.c.b16 %v1068, %v1067
        %v1210 = vpack.c.b16 %v1070, %v1069
        %v1211 = vpack.c.b16 %v1072, %v1071
        %v1212 = vpack.c.b16 %v1074, %v1073
        %v1213 = vpack.c.b16 %v1076, %v1075
        %v1214 = vpack.c.b16 %v1078, %v1077
        %v1215 = vpack.c.b16 %v1080, %v1079
        %v1216 = vpack.c.b16 %v1082, %v1081
        %v1217 = vpack.c.b16 %v1084, %v1083
        %v1218 = vpack.c.b16 %v1086, %v1085
        %v1219 = vpack.c.b16 %v1088, %v1087
        %v1220 = vpack.c.b16 %v1090, %v1089
        %v1221 = vpack.c.b16 %v1092, %v1091
        %v1222 = vpack.c.b16 %v1094, %v1093
        %v1223 = vpack.c.b16 %v1096, %v1095
        %v1224 = vpack.c.b16 %v1098, %v1097
        %v1225 = vpack.c.b16 %v1100, %v1099
        %v1226 = vpack.c.b16 %v1102, %v1101
        %v1227 = vpack.c.b16 %v1104, %v1103
        %v1228 = vpack.c.b16 %v1106, %v1105
        %v1229 = vpack.c.b16 %v1108, %v1107
        %v1230 = vpack.c.b16 %v1110, %v1109
        %v1231 = vpack.c.b16 %v1112, %v1111
        %v1232 = vpack.c.b16 %v1114, %v1113
        %v1233 = vpack.c.b16 %v1116, %v1115
        %v1234 = vpack.c.b16 %v1118, %v1117
        %v1235 = vpack.c.b16 %v1120, %v1119
        %v1236 = vpack.c.b16 %v1122, %v1121
        %v1237 = vpack.c.b16 %v1124, %v1123
        %v1238 = vpack.c.b16 %v1126, %v1125
        %v1239 = vpack.c.b16 %v1128, %v1127
        %v1240 = vpack.c.b16 %v1130, %v1129
        %v1241 = vpack.c.b16 %v1132, %v1131
        %v1242 = vpack.c.b16 %v1134, %v1133
        %v1243 = vpack.c.b16 %v1136, %v1135
        %v1244 = vpack.c.b16 %v1138, %v1137
        %v1245 = vpack.c.b16 %v1140, %v1139
        %v1246 = vpack.c.b16 %v1142, %v1141
        %v1247 = vpack.c.b16 %v1144, %v1143
        %v1248 = vpack.c.b16 %v1146, %v1145
        %v1249 = vpack.c.b16 %v1148, %v1147
        %v1250 = vpack.c.b16 %v1150, %v1149
        %v1251 = vpack.c.b16 %v1152, %v1151
        %v1252 = vpack.c.b16 %v1154, %v1153
        %v1253 = vpack.c.b16 %v1156, %v1155
        %v1254 = vpack.c.b16 %v1158, %v1157
        %v1255 = vpack.c.b16 %v1160, %v1159
        %v1256 = vpack.c.b16 %v1162, %v1161
        %v1257 = vpack.c.b16 %v1164, %v1163
        %v1258 = vpack.c.b16 %v1166, %v1165
        %v1259 = vpack.c.b16 %v1168, %v1167
        %v1260 = vpack.c.b16 %v1170, %v1169
        %v1261 = vpack.c.b16 %v1172, %v1171
        %v1262 = vpack.c.b16 %v1174, %v1173
        %v1263 = vpack.c.b16 %v1176, %v1175
        %v1264 = vpack.c.b16 %v1178, %v1177
        %v1265 = vpack.c.b16 %v1180, %v1179
        %v1266 = vpack.c.b16 %v1182, %v1181
        %v1267 = vpack.c.b16 %v1184, %v1183
        %v1268 = vpack.c.b16 %v1186, %v1185
        %v1269 = vpack.c.b16 %v1188, %v1187
        %v1270 = vpack.c.b16 %v1190, %v1189
        %v1271 = vpack.c.b16 %v1192, %v1191
        %v1272 = vpack.c.b16 %v1194, %v1193
        %v1273 = vpack.c.b16 %v1196, %v1195
        %v1274 = vpack.c.b16 %v1198, %v1197
        %v1275 = vpack.c.b16 %v1200, %v1199
        %v1276 = vpack.c.b16 %v1202, %v1201
        %v1277 = vpack.c.b16 %v1204, %v1203
        %v1278 = vpack.c.b16 %v1206, %v1205
        %1351 = vmatpush.bf16.msra.mxu0 %v1214
        %1352 = vmatpush.bf16.msra.mxu0 %v1213
        %1353 = vmatpush.bf16.msra.mxu0 %v1212
        %1354 = vmatpush.bf16.msra.mxu0 %v1211
        %1355 = vmatpush.bf16.msra.mxu0 %v1210
        %1356 = vmatpush.bf16.msra.mxu0 %v1209
        %1357 = vmatpush.bf16.msra.mxu0 %v1208
        %1358 = vmatpush.bf16.msra.mxu0 %v1207
        %1359 = vmatmul.bf16.gmra.mxu0 %v713
        %v1360 = vpop.f32.mrf.mxu0
        %v1361 = vadd.f32 %v917, %v1360
        %v1362 = vpop.f32.mrf.mxu0
        %v1363 = vadd.f32 %v917, %v1362
        %1364 = vmatmul.bf16.gmra.mxu0 %v722
        %v1365 = vpop.f32.mrf.mxu0
        %v1366 = vadd.f32 %v917, %v1365
        %v1367 = vpop.f32.mrf.mxu0
        %v1368 = vadd.f32 %v917, %v1367
        %1369 = vmatmul.bf16.gmra.mxu0 %v729
        %v1370 = vpop.f32.mrf.mxu0
        %v1371 = vadd.f32 %v917, %v1370
        %v1372 = vpop.f32.mrf.mxu0
        %v1373 = vadd.f32 %v917, %v1372
        %1374 = vmatmul.bf16.gmra.mxu0 %v736
        %v1375 = vpop.f32.mrf.mxu0
        %v1376 = vadd.f32 %v917, %v1375
        %v1377 = vpop.f32.mrf.mxu0
        %v1378 = vadd.f32 %v917, %v1377
        %1379 = vmatmul.bf16.gmra.mxu0 %v743
        %v1380 = vpop.f32.mrf.mxu0
        %v1381 = vadd.f32 %v917, %v1380
        %v1382 = vpop.f32.mrf.mxu0
        %v1383 = vadd.f32 %v917, %v1382
        %1384 = vmatmul.bf16.gmra.mxu0 %v750
        %v1385 = vpop.f32.mrf.mxu0
        %v1386 = vadd.f32 %v917, %v1385
        %v1387 = vpop.f32.mrf.mxu0
        %v1388 = vadd.f32 %v917, %v1387
        %1389 = vmatmul.bf16.gmra.mxu0 %v757
        %v1390 = vpop.f32.mrf.mxu0
        %v1391 = vadd.f32 %v917, %v1390
        %v1392 = vpop.f32.mrf.mxu0
        %v1393 = vadd.f32 %v917, %v1392
        %1394 = vmatmul.bf16.gmra.mxu0 %v764
        %v1395 = vpop.f32.mrf.mxu0
        %v1396 = vadd.f32 %v917, %v1395
        %v1397 = vpop.f32.mrf.mxu0
        %v1398 = vadd.f32 %v917, %v1397
        %1399 = vdwg.mxu0
        %1400 = vmatpush.bf16.msra.mxu0 %v1222
        %1401 = vmatpush.bf16.msra.mxu0 %v1221
        %1402 = vmatpush.bf16.msra.mxu0 %v1220
        %1403 = vmatpush.bf16.msra.mxu0 %v1219
        %1404 = vmatpush.bf16.msra.mxu0 %v1218
        %1405 = vmatpush.bf16.msra.mxu0 %v1217
        %1406 = vmatpush.bf16.msra.mxu0 %v1216
        %1407 = vmatpush.bf16.msra.mxu0 %v1215
        %1408 = vmatmul.bf16.gmra.mxu0 %v714
        %v1409 = vpop.f32.mrf.mxu0
        %v1410 = vadd.f32 %v1361, %v1409
        %v1411 = vpop.f32.mrf.mxu0
        %v1412 = vadd.f32 %v1363, %v1411
        %1413 = vmatmul.bf16.gmra.mxu0 %v717
        %v1414 = vpop.f32.mrf.mxu0
        %v1415 = vadd.f32 %v1366, %v1414
        %v1416 = vpop.f32.mrf.mxu0
        %v1417 = vadd.f32 %v1368, %v1416
        %1418 = vmatmul.bf16.gmra.mxu0 %v720
        %v1419 = vpop.f32.mrf.mxu0
        %v1420 = vadd.f32 %v1371, %v1419
        %v1421 = vpop.f32.mrf.mxu0
        %v1422 = vadd.f32 %v1373, %v1421
        %1423 = vmatmul.bf16.gmra.mxu0 %v727
        %v1424 = vpop.f32.mrf.mxu0
        %v1425 = vadd.f32 %v1376, %v1424
        %v1426 = vpop.f32.mrf.mxu0
        %v1427 = vadd.f32 %v1378, %v1426
        %1428 = vmatmul.bf16.gmra.mxu0 %v734
        %v1429 = vpop.f32.mrf.mxu0
        %v1430 = vadd.f32 %v1381, %v1429
        %v1431 = vpop.f32.mrf.mxu0
        %v1432 = vadd.f32 %v1383, %v1431
        %1433 = vmatmul.bf16.gmra.mxu0 %v741
        %v1434 = vpop.f32.mrf.mxu0
        %v1435 = vadd.f32 %v1386, %v1434
        %v1436 = vpop.f32.mrf.mxu0
        %v1437 = vadd.f32 %v1388, %v1436
        %1438 = vmatmul.bf16.gmra.mxu0 %v748
        %v1439 = vpop.f32.mrf.mxu0
        %v1440 = vadd.f32 %v1391, %v1439
        %v1441 = vpop.f32.mrf.mxu0
        %v1442 = vadd.f32 %v1393, %v1441
        %1443 = vmatmul.bf16.gmra.mxu0 %v755
        %v1444 = vpop.f32.mrf.mxu0
        %v1445 = vadd.f32 %v1396, %v1444
        %v1446 = vpop.f32.mrf.mxu0
        %v1447 = vadd.f32 %v1398, %v1446
        %1448 = vdwg.mxu0
        %1449 = vmatpush.bf16.msra.mxu0 %v1230
        %1450 = vmatpush.bf16.msra.mxu0 %v1229
        %1451 = vmatpush.bf16.msra.mxu0 %v1228
        %1452 = vmatpush.bf16.msra.mxu0 %v1227
        %1453 = vmatpush.bf16.msra.mxu0 %v1226
        %1454 = vmatpush.bf16.msra.mxu0 %v1225
        %1455 = vmatpush.bf16.msra.mxu0 %v1224
        %1456 = vmatpush.bf16.msra.mxu0 %v1223
        %1457 = vmatmul.bf16.gmra.mxu0 %v715
        %v1458 = vpop.f32.mrf.mxu0
        %v1459 = vadd.f32 %v1410, %v1458
        %v1460 = vpop.f32.mrf.mxu0
        %v1461 = vadd.f32 %v1412, %v1460
        %1462 = vmatmul.bf16.gmra.mxu0 %v723
        %v1463 = vpop.f32.mrf.mxu0
        %v1464 = vadd.f32 %v1415, %v1463
        %v1465 = vpop.f32.mrf.mxu0
        %v1466 = vadd.f32 %v1417, %v1465
        %1467 = vmatmul.bf16.gmra.mxu0 %v730
        %v1468 = vpop.f32.mrf.mxu0
        %v1469 = vadd.f32 %v1420, %v1468
        %v1470 = vpop.f32.mrf.mxu0
        %v1471 = vadd.f32 %v1422, %v1470
        %1472 = vmatmul.bf16.gmra.mxu0 %v737
        %v1473 = vpop.f32.mrf.mxu0
        %v1474 = vadd.f32 %v1425, %v1473
        %v1475 = vpop.f32.mrf.mxu0
        %v1476 = vadd.f32 %v1427, %v1475
        %1477 = vmatmul.bf16.gmra.mxu0 %v744
        %v1478 = vpop.f32.mrf.mxu0
        %v1479 = vadd.f32 %v1430, %v1478
        %v1480 = vpop.f32.mrf.mxu0
        %v1481 = vadd.f32 %v1432, %v1480
        %1482 = vmatmul.bf16.gmra.mxu0 %v751
        %v1483 = vpop.f32.mrf.mxu0
        %v1484 = vadd.f32 %v1435, %v1483
        %v1485 = vpop.f32.mrf.mxu0
        %v1486 = vadd.f32 %v1437, %v1485
        %1487 = vmatmul.bf16.gmra.mxu0 %v758
        %v1488 = vpop.f32.mrf.mxu0
        %v1489 = vadd.f32 %v1440, %v1488
        %v1490 = vpop.f32.mrf.mxu0
        %v1491 = vadd.f32 %v1442, %v1490
        %1492 = vmatmul.bf16.gmra.mxu0 %v765
        %v1493 = vpop.f32.mrf.mxu0
        %v1494 = vadd.f32 %v1445, %v1493
        %v1495 = vpop.f32.mrf.mxu0
        %v1496 = vadd.f32 %v1447, %v1495
        %1497 = vdwg.mxu0
        %1498 = vmatpush.bf16.msra.mxu0 %v1238
        %1499 = vmatpush.bf16.msra.mxu0 %v1237
        %1500 = vmatpush.bf16.msra.mxu0 %v1236
        %1501 = vmatpush.bf16.msra.mxu0 %v1235
        %1502 = vmatpush.bf16.msra.mxu0 %v1234
        %1503 = vmatpush.bf16.msra.mxu0 %v1233
        %1504 = vmatpush.bf16.msra.mxu0 %v1232
        %1505 = vmatpush.bf16.msra.mxu0 %v1231
        %1506 = vmatmul.bf16.gmra.mxu0 %v716
        %v1507 = vpop.f32.mrf.mxu0
        %v1508 = vadd.f32 %v1459, %v1507
        %v1509 = vpop.f32.mrf.mxu0
        %v1510 = vadd.f32 %v1461, %v1509
        %1511 = vmatmul.bf16.gmra.mxu0 %v724
        %v1512 = vpop.f32.mrf.mxu0
        %v1513 = vadd.f32 %v1464, %v1512
        %v1514 = vpop.f32.mrf.mxu0
        %v1515 = vadd.f32 %v1466, %v1514
        %1516 = vmatmul.bf16.gmra.mxu0 %v731
        %v1517 = vpop.f32.mrf.mxu0
        %v1518 = vadd.f32 %v1469, %v1517
        %v1519 = vpop.f32.mrf.mxu0
        %v1520 = vadd.f32 %v1471, %v1519
        %1521 = vmatmul.bf16.gmra.mxu0 %v738
        %v1522 = vpop.f32.mrf.mxu0
        %v1523 = vadd.f32 %v1474, %v1522
        %v1524 = vpop.f32.mrf.mxu0
        %v1525 = vadd.f32 %v1476, %v1524
        %1526 = vmatmul.bf16.gmra.mxu0 %v745
        %v1527 = vpop.f32.mrf.mxu0
        %v1528 = vadd.f32 %v1479, %v1527
        %v1529 = vpop.f32.mrf.mxu0
        %v1530 = vadd.f32 %v1481, %v1529
        %1531 = vmatmul.bf16.gmra.mxu0 %v752
        %v1532 = vpop.f32.mrf.mxu0
        %v1533 = vadd.f32 %v1484, %v1532
        %v1534 = vpop.f32.mrf.mxu0
        %v1535 = vadd.f32 %v1486, %v1534
        %1536 = vmatmul.bf16.gmra.mxu0 %v759
        %v1537 = vpop.f32.mrf.mxu0
        %v1538 = vadd.f32 %v1489, %v1537
        %v1539 = vpop.f32.mrf.mxu0
        %v1540 = vadd.f32 %v1491, %v1539
        %1541 = vmatmul.bf16.gmra.mxu0 %v766
        %v1542 = vpop.f32.mrf.mxu0
        %v1543 = vadd.f32 %v1494, %v1542
        %v1544 = vpop.f32.mrf.mxu0
        %v1545 = vadd.f32 %v1496, %v1544
        %1546 = vdwg.mxu0
        %1547 = vmatpush.bf16.msra.mxu0 %v1246
        %1548 = vmatpush.bf16.msra.mxu0 %v1245
        %1549 = vmatpush.bf16.msra.mxu0 %v1244
        %1550 = vmatpush.bf16.msra.mxu0 %v1243
        %1551 = vmatpush.bf16.msra.mxu0 %v1242
        %1552 = vmatpush.bf16.msra.mxu0 %v1241
        %1553 = vmatpush.bf16.msra.mxu0 %v1240
        %1554 = vmatpush.bf16.msra.mxu0 %v1239
        %1555 = vmatmul.bf16.gmra.mxu0 %v717
        %v1556 = vpop.f32.mrf.mxu0
        %v1557 = vadd.f32 %v1508, %v1556
        %v1558 = vpop.f32.mrf.mxu0
        %v1559 = vadd.f32 %v1510, %v1558
        %1560 = vmatmul.bf16.gmra.mxu0 %v720
        %v1561 = vpop.f32.mrf.mxu0
        %v1562 = vadd.f32 %v1513, %v1561
        %v1563 = vpop.f32.mrf.mxu0
        %v1564 = vadd.f32 %v1515, %v1563
        %1565 = vmatmul.bf16.gmra.mxu0 %v727
        %v1566 = vpop.f32.mrf.mxu0
        %v1567 = vadd.f32 %v1518, %v1566
        %v1568 = vpop.f32.mrf.mxu0
        %v1569 = vadd.f32 %v1520, %v1568
        %1570 = vmatmul.bf16.gmra.mxu0 %v734
        %v1571 = vpop.f32.mrf.mxu0
        %v1572 = vadd.f32 %v1523, %v1571
        %v1573 = vpop.f32.mrf.mxu0
        %v1574 = vadd.f32 %v1525, %v1573
        %1575 = vmatmul.bf16.gmra.mxu0 %v741
        %v1576 = vpop.f32.mrf.mxu0
        %v1577 = vadd.f32 %v1528, %v1576
        %v1578 = vpop.f32.mrf.mxu0
        %v1579 = vadd.f32 %v1530, %v1578
        %1580 = vmatmul.bf16.gmra.mxu0 %v748
        %v1581 = vpop.f32.mrf.mxu0
        %v1582 = vadd.f32 %v1533, %v1581
        %v1583 = vpop.f32.mrf.mxu0
        %v1584 = vadd.f32 %v1535, %v1583
        %1585 = vmatmul.bf16.gmra.mxu0 %v755
        %v1586 = vpop.f32.mrf.mxu0
        %v1587 = vadd.f32 %v1538, %v1586
        %v1588 = vpop.f32.mrf.mxu0
        %v1589 = vadd.f32 %v1540, %v1588
        %1590 = vmatmul.bf16.gmra.mxu0 %v762
        %v1591 = vpop.f32.mrf.mxu0
        %v1592 = vadd.f32 %v1543, %v1591
        %v1593 = vpop.f32.mrf.mxu0
        %v1594 = vadd.f32 %v1545, %v1593
        %1595 = vdwg.mxu0
        %1596 = vmatpush.bf16.msra.mxu0 %v1254
        %1597 = vmatpush.bf16.msra.mxu0 %v1253
        %1598 = vmatpush.bf16.msra.mxu0 %v1252
        %1599 = vmatpush.bf16.msra.mxu0 %v1251
        %1600 = vmatpush.bf16.msra.mxu0 %v1250
        %1601 = vmatpush.bf16.msra.mxu0 %v1249
        %1602 = vmatpush.bf16.msra.mxu0 %v1248
        %1603 = vmatpush.bf16.msra.mxu0 %v1247
        %1604 = vmatmul.bf16.gmra.mxu0 %v718
        %v1605 = vpop.f32.mrf.mxu0
        %v1606 = vadd.f32 %v1557, %v1605
        %v1607 = vpop.f32.mrf.mxu0
        %v1608 = vadd.f32 %v1559, %v1607
        %1609 = vmatmul.bf16.gmra.mxu0 %v725
        %v1610 = vpop.f32.mrf.mxu0
        %v1611 = vadd.f32 %v1562, %v1610
        %v1612 = vpop.f32.mrf.mxu0
        %v1613 = vadd.f32 %v1564, %v1612
        %1614 = vmatmul.bf16.gmra.mxu0 %v732
        %v1615 = vpop.f32.mrf.mxu0
        %v1616 = vadd.f32 %v1567, %v1615
        %v1617 = vpop.f32.mrf.mxu0
        %v1618 = vadd.f32 %v1569, %v1617
        %1619 = vmatmul.bf16.gmra.mxu0 %v739
        %v1620 = vpop.f32.mrf.mxu0
        %v1621 = vadd.f32 %v1572, %v1620
        %v1622 = vpop.f32.mrf.mxu0
        %v1623 = vadd.f32 %v1574, %v1622
        %1624 = vmatmul.bf16.gmra.mxu0 %v746
        %v1625 = vpop.f32.mrf.mxu0
        %v1626 = vadd.f32 %v1577, %v1625
        %v1627 = vpop.f32.mrf.mxu0
        %v1628 = vadd.f32 %v1579, %v1627
        %1629 = vmatmul.bf16.gmra.mxu0 %v753
        %v1630 = vpop.f32.mrf.mxu0
        %v1631 = vadd.f32 %v1582, %v1630
        %v1632 = vpop.f32.mrf.mxu0
        %v1633 = vadd.f32 %v1584, %v1632
        %1634 = vmatmul.bf16.gmra.mxu0 %v760
        %v1635 = vpop.f32.mrf.mxu0
        %v1636 = vadd.f32 %v1587, %v1635
        %v1637 = vpop.f32.mrf.mxu0
        %v1638 = vadd.f32 %v1589, %v1637
        %1639 = vmatmul.bf16.gmra.mxu0 %v767
        %v1640 = vpop.f32.mrf.mxu0
        %v1641 = vadd.f32 %v1592, %v1640
        %v1642 = vpop.f32.mrf.mxu0
        %v1643 = vadd.f32 %v1594, %v1642
        %1644 = vdwg.mxu0
        %1645 = vmatpush.bf16.msra.mxu0 %v1262
        %1646 = vmatpush.bf16.msra.mxu0 %v1261
        %1647 = vmatpush.bf16.msra.mxu0 %v1260
        %1648 = vmatpush.bf16.msra.mxu0 %v1259
        %1649 = vmatpush.bf16.msra.mxu0 %v1258
        %1650 = vmatpush.bf16.msra.mxu0 %v1257
        %1651 = vmatpush.bf16.msra.mxu0 %v1256
        %1652 = vmatpush.bf16.msra.mxu0 %v1255
        %1653 = vmatmul.bf16.gmra.mxu0 %v719
        %v1654 = vpop.f32.mrf.mxu0
        %v1655 = vadd.f32 %v1606, %v1654
        %v1656 = vpop.f32.mrf.mxu0
        %v1657 = vadd.f32 %v1608, %v1656
        %1658 = vmatmul.bf16.gmra.mxu0 %v726
        %v1659 = vpop.f32.mrf.mxu0
        %v1660 = vadd.f32 %v1611, %v1659
        %v1661 = vpop.f32.mrf.mxu0
        %v1662 = vadd.f32 %v1613, %v1661
        %1663 = vmatmul.bf16.gmra.mxu0 %v733
        %v1664 = vpop.f32.mrf.mxu0
        %v1665 = vadd.f32 %v1616, %v1664
        %v1666 = vpop.f32.mrf.mxu0
        %v1667 = vadd.f32 %v1618, %v1666
        %1668 = vmatmul.bf16.gmra.mxu0 %v740
        %v1669 = vpop.f32.mrf.mxu0
        %v1670 = vadd.f32 %v1621, %v1669
        %v1671 = vpop.f32.mrf.mxu0
        %v1672 = vadd.f32 %v1623, %v1671
        %1673 = vmatmul.bf16.gmra.mxu0 %v747
        %v1674 = vpop.f32.mrf.mxu0
        %v1675 = vadd.f32 %v1626, %v1674
        %v1676 = vpop.f32.mrf.mxu0
        %v1677 = vadd.f32 %v1628, %v1676
        %1678 = vmatmul.bf16.gmra.mxu0 %v754
        %v1679 = vpop.f32.mrf.mxu0
        %v1680 = vadd.f32 %v1631, %v1679
        %v1681 = vpop.f32.mrf.mxu0
        %v1682 = vadd.f32 %v1633, %v1681
        %1683 = vmatmul.bf16.gmra.mxu0 %v761
        %v1684 = vpop.f32.mrf.mxu0
        %v1685 = vadd.f32 %v1636, %v1684
        %v1686 = vpop.f32.mrf.mxu0
        %v1687 = vadd.f32 %v1638, %v1686
        %1688 = vmatmul.bf16.gmra.mxu0 %v768
        %v1689 = vpop.f32.mrf.mxu0
        %v1690 = vadd.f32 %v1641, %v1689
        %v1691 = vpop.f32.mrf.mxu0
        %v1692 = vadd.f32 %v1643, %v1691
        %1693 = vdwg.mxu0
        %1694 = vmatpush.bf16.msra.mxu0 %v1270
        %1695 = vmatpush.bf16.msra.mxu0 %v1269
        %1696 = vmatpush.bf16.msra.mxu0 %v1268
        %1697 = vmatpush.bf16.msra.mxu0 %v1267
        %1698 = vmatpush.bf16.msra.mxu0 %v1266
        %1699 = vmatpush.bf16.msra.mxu0 %v1265
        %1700 = vmatpush.bf16.msra.mxu0 %v1264
        %1701 = vmatpush.bf16.msra.mxu0 %v1263
        %1702 = vmatmul.bf16.gmra.mxu0 %v720
        %v1703 = vpop.f32.mrf.mxu0
        %v1704 = vadd.f32 %v1655, %v1703
        %v1705 = vpop.f32.mrf.mxu0
        %v1706 = vadd.f32 %v1657, %v1705
        %1707 = vmatmul.bf16.gmra.mxu0 %v727
        %v1708 = vpop.f32.mrf.mxu0
        %v1709 = vadd.f32 %v1660, %v1708
        %v1710 = vpop.f32.mrf.mxu0
        %v1711 = vadd.f32 %v1662, %v1710
        %1712 = vmatmul.bf16.gmra.mxu0 %v734
        %v1713 = vpop.f32.mrf.mxu0
        %v1714 = vadd.f32 %v1665, %v1713
        %v1715 = vpop.f32.mrf.mxu0
        %v1716 = vadd.f32 %v1667, %v1715
        %1717 = vmatmul.bf16.gmra.mxu0 %v741
        %v1718 = vpop.f32.mrf.mxu0
        %v1719 = vadd.f32 %v1670, %v1718
        %v1720 = vpop.f32.mrf.mxu0
        %v1721 = vadd.f32 %v1672, %v1720
        %1722 = vmatmul.bf16.gmra.mxu0 %v748
        %v1723 = vpop.f32.mrf.mxu0
        %v1724 = vadd.f32 %v1675, %v1723
        %v1725 = vpop.f32.mrf.mxu0
        %v1726 = vadd.f32 %v1677, %v1725
        %1727 = vmatmul.bf16.gmra.mxu0 %v755
        %v1728 = vpop.f32.mrf.mxu0
        %v1729 = vadd.f32 %v1680, %v1728
        %v1730 = vpop.f32.mrf.mxu0
        %v1731 = vadd.f32 %v1682, %v1730
        %1732 = vmatmul.bf16.gmra.mxu0 %v762
        %v1733 = vpop.f32.mrf.mxu0
        %v1734 = vadd.f32 %v1685, %v1733
        %v1735 = vpop.f32.mrf.mxu0
        %v1736 = vadd.f32 %v1687, %v1735
        %1737 = vmatmul.bf16.gmra.mxu0 %v769
        %v1738 = vpop.f32.mrf.mxu0
        %v1739 = vadd.f32 %v1690, %v1738
        %v1740 = vpop.f32.mrf.mxu0
        %v1741 = vadd.f32 %v1692, %v1740
        %1742 = vdwg.mxu0
        %1743 = vmatpush.bf16.msra.mxu0 %v1278
        %1744 = vmatpush.bf16.msra.mxu0 %v1277
        %1745 = vmatpush.bf16.msra.mxu0 %v1276
        %1746 = vmatpush.bf16.msra.mxu0 %v1275
        %1747 = vmatpush.bf16.msra.mxu0 %v1274
        %1748 = vmatpush.bf16.msra.mxu0 %v1273
        %1749 = vmatpush.bf16.msra.mxu0 %v1272
        %1750 = vmatpush.bf16.msra.mxu0 %v1271
        %1751 = vmatmul.bf16.gmra.mxu0 %v721
        %v1752 = vpop.f32.mrf.mxu0
        %v1753 = vadd.f32 %v1704, %v1752
        %v1754 = vpop.f32.mrf.mxu0
        %v1755 = vadd.f32 %v1706, %v1754
        %1756 = vmatmul.bf16.gmra.mxu0 %v728
        %v1757 = vpop.f32.mrf.mxu0
        %v1758 = vadd.f32 %v1709, %v1757
        %v1759 = vpop.f32.mrf.mxu0
        %v1760 = vadd.f32 %v1711, %v1759
        %1761 = vmatmul.bf16.gmra.mxu0 %v735
        %v1762 = vpop.f32.mrf.mxu0
        %v1763 = vadd.f32 %v1714, %v1762
        %v1764 = vpop.f32.mrf.mxu0
        %v1765 = vadd.f32 %v1716, %v1764
        %1766 = vmatmul.bf16.gmra.mxu0 %v742
        %v1767 = vpop.f32.mrf.mxu0
        %v1768 = vadd.f32 %v1719, %v1767
        %v1769 = vpop.f32.mrf.mxu0
        %v1770 = vadd.f32 %v1721, %v1769
        %1771 = vmatmul.bf16.gmra.mxu0 %v749
        %v1772 = vpop.f32.mrf.mxu0
        %v1773 = vadd.f32 %v1724, %v1772
        %v1774 = vpop.f32.mrf.mxu0
        %v1775 = vadd.f32 %v1726, %v1774
        %1776 = vmatmul.bf16.gmra.mxu0 %v756
        %v1777 = vpop.f32.mrf.mxu0
        %v1778 = vadd.f32 %v1729, %v1777
        %v1779 = vpop.f32.mrf.mxu0
        %v1780 = vadd.f32 %v1731, %v1779
        %1781 = vmatmul.bf16.gmra.mxu0 %v763
        %v1782 = vpop.f32.mrf.mxu0
        %v1783 = vadd.f32 %v1734, %v1782
        %v1784 = vpop.f32.mrf.mxu0
        %v1785 = vadd.f32 %v1736, %v1784
        %1786 = vmatmul.bf16.gmra.mxu0 %v770
        %v1787 = vpop.f32.mrf.mxu0
        %v1788 = vadd.f32 %v1739, %v1787
        %v1789 = vpop.f32.mrf.mxu0
        %v1790 = vadd.f32 %v1741, %v1789
        %1791 = vdwg.mxu0
        %v1792 = vmax.f32 %v1753, 0.0
        %v1793 = vmax.f32 %v1755, 0.0
        %v1794 = vmax.f32 %v1758, 0.0
        %v1795 = vmax.f32 %v1760, 0.0
        %v1796 = vmax.f32 %v1763, 0.0
        %v1797 = vmax.f32 %v1765, 0.0
        %v1798 = vmax.f32 %v1768, 0.0
        %v1799 = vmax.f32 %v1770, 0.0
        %v1800 = vmax.f32 %v1773, 0.0
        %v1801 = vmax.f32 %v1775, 0.0
        %v1802 = vmax.f32 %v1778, 0.0
        %v1803 = vmax.f32 %v1780, 0.0
        %v1804 = vmax.f32 %v1783, 0.0
        %v1805 = vmax.f32 %v1785, 0.0
        %v1806 = vmax.f32 %v1788, 0.0
        %v1807 = vmax.f32 %v1790, 0.0
        %1808 = vst [vmem:[%s207] sm:$0xff] %v1792
        %1809 = vst [vmem:[%s207 + $0x8] sm:$0xff] %v1793
        %1810 = vst [vmem:[%s207 + $0x10] sm:$0xff] %v1794
        %1811 = vst [vmem:[%s207 + $0x18] sm:$0xff] %v1795
        %1812 = vst [vmem:[%s207 + $0x20] sm:$0xff] %v1796
        %1813 = vst [vmem:[%s207 + $0x28] sm:$0xff] %v1797
        %1814 = vst [vmem:[%s207 + $0x30] sm:$0xff] %v1798
        %1815 = vst [vmem:[%s207 + $0x38] sm:$0xff] %v1799
        %1816 = vst [vmem:[%s207 + $0x40] sm:$0xff] %v1800
        %1817 = vst [vmem:[%s207 + $0x48] sm:$0xff] %v1801
        %1818 = vst [vmem:[%s207 + $0x50] sm:$0xff] %v1802
        %1819 = vst [vmem:[%s207 + $0x58] sm:$0xff] %v1803
        %1820 = vst [vmem:[%s207 + $0x60] sm:$0xff] %v1804
        %1821 = vst [vmem:[%s207 + $0x68] sm:$0xff] %v1805
        %1822 = vst [vmem:[%s207 + $0x70] sm:$0xff] %v1806
        %1823 = vst [vmem:[%s207 + $0x78] sm:$0xff] %v1807
        %s1824 = sand.u32 %s97, 1
        %s1825 = scalar_lea.sflag [#allocation4], %s1824
        %s1826 = sand.u32 %s97, 1
        %s1827 = smul.addr %s1826, 128
        %s1828 = scalar_lea.vmem [#allocation7], %s1827
        // Predicated region
        $region41: #{tpu_custom_call.1} parent=31 // pred_check
          %p1829 = pneg %p107
        $region42: #{tpu_custom_call.1} parent=31 // pred_check_branch
          %1831 = sbr.rel (%p1829) target = $region44
        $region43: #{tpu_custom_call.1} parent=31 // pred_region
          %1833 = vsyncadd %s1825, 0
          %s1834 = smul.addr %s21, 16
          %s1835 = smul.addr %s1834, 8
          %s1836 = scalar_lea.hbm %s3, %s1835
          %s1837 = sshll.u32 %s1828, 4
          %s1838 = int_to_ptr.vmem [resolvable:$true] %s1837
          %s1839 = sshll.u32 %s1836, 4
          %s1840 = int_to_ptr.hbm [resolvable:$true] %s1839
          %1845 = dma.vmem_to_hbm [thread:$0]  %s1838, 2048, %s1840, %s1825, 128, 128, 8
        $region44: #{tpu_custom_call.1} parent=31 // pred_fallthru
          _
      $region32: #{tpu_custom_call.1} parent=5 // pred_fallthru
        _
      %p1846 = scmp.le.s32.totalorder 2, %s16
      // Predicated region
      $region45: #{tpu_custom_call.1} parent=5 // pred_check
        %p1847 = pneg %p1846
      $region46: #{tpu_custom_call.1} parent=5 // pred_check_branch
        %1849 = sbr.rel (%p1847) target = $region48
      $region47: #{tpu_custom_call.1} parent=5 // pred_region
        %s1850 = ssub.s32 %s16, 2
        // Predicated region
        $region49: #{tpu_custom_call.1} parent=47 // pred_check
          %p1851 = pneg %p113
        $region50: #{tpu_custom_call.1} parent=47 // pred_check_branch
          %1853 = sbr.rel (%p1851) target = $region52
        $region51: #{tpu_custom_call.1} parent=47 // pred_region
          %s1854 = sand.u32 %s98, 1
          %s1855 = scalar_lea.sflag [#allocation4], %s1854
          %s1856 = sand.u32 %s98, 1
          %s1857 = smul.addr %s1856, 128
          %s1858 = scalar_lea.vmem [#allocation7], %s1857
          %1860 = dma.done %s1855, 2048
        $region52: #{tpu_custom_call.1} parent=47 // pred_fallthru
          _
      $region48: #{tpu_custom_call.1} parent=5 // pred_fallthru
        _
    $region6: #{tpu_custom_call.1} parent=1 // loop_footer
      %s20 = sadd.s32 1, %s16
    $region7: #{tpu_custom_call.1} parent=1 // loop_footer_branch
      %15 = sbr.rel target = $region3
    $region8: #{tpu_custom_call.1} parent=1 // loop_exit
      _
    %1861 = vsyncpa [#allocation3], 1
    %s1862 = scalar_lea.sflag [#allocation3], 1
    %1863 = vsyncpa %s1862, 1
    %1864 = vsyncpa [#allocation6], 1
    %1865 = vsyncpa [#allocation4], 1
    %s1866 = scalar_lea.sflag [#allocation4], 1
    %1867 = vsyncpa %s1866, 1

</llo_original>
